<compile_context>
chip_gen: v7x
topology: tpu7x:2x2x1
jax: 0.10.0
libtpu: 0.0.40
codegen_flags: <defaults>
</compile_context>

<pallas_src>
import jax
import jax.numpy as jnp
from jax import lax
from jax.experimental import pallas as pl
from jax.experimental.pallas import tpu as pltpu

EPS = 1e-5

# Dimensions implied by the PyTorch module
C_IN, L_IN = 8, 736
C_OUT, K, STRIDE = 40, 20, 4
L1 = (L_IN - K) // STRIDE + 1          # 180
POOL = 4
L2 = (L1 - POOL) // POOL + 1           # 45  == lstm1 input_size
H1, H2 = 30, 10                        # lstm hidden sizes
H1P, H2P = 32, 32                      # lane-aligned (zero-padded) hidden sizes
G1P, G2P = 4 * H1P, 4 * H2P            # padded gate widths (128, 128)
N_CLASSES = 2


# ------------------------------ fused forward kernel ------------------------------
def cnn_lstm_kernel(patches_ref, wcol_ref, bconv_ref, inv1_ref, b1_ref,
                    wih1_ref, whh1_ref, bl1_ref,
                    inv2_ref, b2_ref, w2s_ref, bl2_ref,
                    inv3_ref, b3_ref, wd_ref, bd_ref,
                    out_ref, xproj_s, w3_s):
    n_seq = out_ref.shape[0]                    # module's LSTM seq length == batch size N
    nl2 = n_seq * L2

    # ---- Conv1d(8->40, k=20, s=4) as one batched matmul + bias + ReLU + BN1(eval, folded) ----
    y = jnp.dot(wcol_ref[...], patches_ref[...],
                preferred_element_type=jnp.float32)            # (40, POOL*N*L2)
    y = jnp.maximum(y + bconv_ref[...], 0.0)                   # conv bias + ReLU
    y = y * inv1_ref[...] + b1_ref[...]                        # BN1 eval affine
    # dropout1: identity (eval mode)

    # ---- MaxPool1d(4,4): columns pre-ordered (pool_offset, sample, out_pos) ----
    pooled = jnp.maximum(
        jnp.maximum(y[:, 0 * nl2:1 * nl2], y[:, 1 * nl2:2 * nl2]),
        jnp.maximum(y[:, 2 * nl2:3 * nl2], y[:, 3 * nl2:4 * nl2]))   # (40, N*L2)

    # ---- Hoist LSTM1 input projections (+bias) off the serial recurrent path ----
    wih1 = wih1_ref[...]
    bl1 = bl1_ref[...]
    for t in range(n_seq):                                     # tiny static loop, not recurrent
        xt = pooled[:, t * L2:(t + 1) * L2]                    # (40, 45) sample t, LSTM layout
        xproj_s[t] = jnp.dot(xt, wih1, preferred_element_type=jnp.float32) + bl1

    # ---- Serial recurrence: LSTM1 -> BN2 -> LSTM2 -> BN3 (one step per sample) ----
    whh1 = whh1_ref[...]
    w2s = w2s_ref[...]
    bl2 = bl2_ref[...]
    inv2 = inv2_ref[...]
    b2 = b2_ref[...]
    inv3 = inv3_ref[...]
    b3 = b3_ref[...]

    def step(t, carry):
        h1, c1, h2, c2 = carry
        # LSTM1 (PyTorch gate order i, f, g, o; gates padded 30->32 -> 32-aligned slices)
        g1 = xproj_s[t] + jnp.dot(h1, whh1, preferred_element_type=jnp.float32)   # (40, 128)
        i1 = jax.nn.sigmoid(g1[:, 0:H1P])
        f1 = jax.nn.sigmoid(g1[:, H1P:2 * H1P])
        u1 = jnp.tanh(g1[:, 2 * H1P:3 * H1P])
        o1 = jax.nn.sigmoid(g1[:, 3 * H1P:4 * H1P])
        c1 = f1 * c1 + i1 * u1
        h1 = o1 * jnp.tanh(c1)                                 # (40, 32), pad cols stay 0

        # dropout2: identity; BatchNorm1d(40) eval (channel = row dim), folded affine
        z = h1 * inv2 + b2

        # LSTM2: single fused matmul on [z | h2] against stacked, gate-padded weights
        g2 = jnp.dot(jnp.concatenate([z, h2], axis=1), w2s,
                     preferred_element_type=jnp.float32) + bl2                     # (40, 128)
        i2 = jax.nn.sigmoid(g2[:, 0:H2P])
        f2 = jax.nn.sigmoid(g2[:, H2P:2 * H2P])
        u2 = jnp.tanh(g2[:, 2 * H2P:3 * H2P])
        o2 = jax.nn.sigmoid(g2[:, 3 * H2P:4 * H2P])
        c2 = f2 * c2 + i2 * u2
        h2 = o2 * jnp.tanh(c2)                                 # (40, 32), pad cols stay 0

        # dropout3: identity; BatchNorm1d(40) eval; stash for the (post-loop) dense head
        w3_s[t] = h2 * inv3 + b3
        return (h1, c1, h2, c2)

    z1 = jnp.zeros((C_OUT, H1P), jnp.float32)
    z2 = jnp.zeros((C_OUT, H2P), jnp.float32)
    _ = lax.fori_loop(0, n_seq, step, (z1, z1, z2, z2), unroll=True)

    # ---- Flatten(40*10) + Linear(400, 2) + Softmax(dim=1), once, after the recurrence ----
    w3_all = w3_s[...]                                                             # (N, 40, 32)
    l0 = jnp.sum(jnp.sum(w3_all * wd_ref[0], axis=2), axis=1, keepdims=True)       # (N, 1)
    l1 = jnp.sum(jnp.sum(w3_all * wd_ref[1], axis=2), axis=1, keepdims=True)       # (N, 1)
    logits = jnp.concatenate([l0, l1], axis=1) + bd_ref[...]                       # (N, 2)
    mx = jnp.max(logits, axis=1, keepdims=True)
    e = jnp.exp(logits - mx)
    out_ref[...] = e * pl.reciprocal(jnp.sum(e, axis=1, keepdims=True), approx=True)


# --------------------------- one-time parameter preparation ---------------------------
def prepare_params(params):
    """Hoisted weight re-layout: transposes, gate padding, BN folding (done once)."""
    (w_conv, b_conv, g1, bt1, m1, v1,
     w_ih1, w_hh1, b_ih1, b_hh1, g2, bt2, m2, v2,
     w_ih2, w_hh2, b_ih2, b_hh2, g3, bt3, m3, v3,
     w_dense, b_dense) = params

    def pad_gate_cols(w_t, h, hp):     # (in, 4h) -> (in, 4hp), zero pad per gate block
        blocks = [jnp.pad(w_t[:, i * h:(i + 1) * h], ((0, 0), (0, hp - h)))
                  for i in range(4)]
        return jnp.concatenate(blocks, axis=1)

    def pad_gate_vec(b, h, hp):
        blocks = [jnp.pad(b[i * h:(i + 1) * h], (0, hp - h)) for i in range(4)]
        return jnp.concatenate(blocks)

    inv1 = g1 * lax.rsqrt(v1 + EPS)
    inv2 = g2 * lax.rsqrt(v2 + EPS)
    inv3 = g3 * lax.rsqrt(v3 + EPS)

    wcol = w_conv.reshape(C_OUT, C_IN * K)                         # (40, 160)
    bconv = b_conv.reshape(C_OUT, 1)
    inv1c = inv1.reshape(C_OUT, 1)
    b1aff = (bt1 - m1 * inv1).reshape(C_OUT, 1)

    # LSTM1: input projection weight (45,128) and recurrent weight (32,128), gate-padded
    wih1p = pad_gate_cols(w_ih1.T, H1, H1P)                                          # (45, 128)
    whh1p = pad_gate_cols(jnp.pad(w_hh1.T, ((0, H1P - H1), (0, 0))), H1, H1P)        # (32, 128)
    bl1p = pad_gate_vec(b_ih1 + b_hh1, H1, H1P).reshape(1, G1P)

    inv2c = inv2.reshape(C_OUT, 1)
    b2aff = (bt2 - m2 * inv2).reshape(C_OUT, 1)

    # LSTM2: stacked [W_ih ; W_hh] for the fused [z | h2] matmul; padded rows are zero so
    # garbage in z's padded columns contributes nothing.
    wih2p = pad_gate_cols(jnp.pad(w_ih2.T, ((0, H1P - H1), (0, 0))), H2, H2P)        # (32, 128)
    whh2p = pad_gate_cols(jnp.pad(w_hh2.T, ((0, H2P - H2), (0, 0))), H2, H2P)        # (32, 128)
    w2s = jnp.concatenate([wih2p, whh2p], axis=0)                                    # (64, 128)
    bl2p = pad_gate_vec(b_ih2 + b_hh2, H2, H2P).reshape(1, G2P)

    inv3c = inv3.reshape(C_OUT, 1)
    b3aff = (bt3 - m3 * inv3).reshape(C_OUT, 1)

    # Dense(400, 2): (2,400) -> (2,40,10) -> zero-pad hidden to 32 (matches w3_s layout)
    wd3 = jnp.pad(w_dense.reshape(N_CLASSES, C_OUT, H2),
                  ((0, 0), (0, 0), (0, H2P - H2)))                                   # (2, 40, 32)
    bd = b_dense.reshape(1, N_CLASSES)

    return (wcol, bconv, inv1c, b1aff, wih1p, whh1p, bl1p,
            inv2c, b2aff, w2s, bl2p, inv3c, b3aff, wd3, bd)


# ------------------------------------ forward wrapper ------------------------------------
@jax.jit
def cnn_lstm_forward(x, prepped):
    n = x.shape[0]
    (wcol, bconv, inv1c, b1aff, wih1p, whh1p, bl1p,
     inv2c, b2aff, w2s, bl2p, inv3c, b3aff, wd3, bd) = prepped

    # im2col (the only per-call glue): conv positions ordered (pool_offset r, sample n,
    # pooled position j) so MaxPool becomes a max over 4 contiguous lane blocks in-kernel.
    r = jnp.arange(POOL)
    j = jnp.arange(L2)
    k = jnp.arange(K)
    col = (POOL * j[None, :, None] + r[:, None, None]) * STRIDE + k[None, None, :]   # (4,45,20)
    patches = x[:, :, col]                                                           # (N,8,4,45,20)
    patches = jnp.transpose(patches, (1, 4, 2, 0, 3)).reshape(C_IN * K, POOL * n * L2)

    return pl.pallas_call(
        cnn_lstm_kernel,
        out_shape=jax.ShapeDtypeStruct((n, N_CLASSES), jnp.float32),
        scratch_shapes=[
            pltpu.VMEM((n, C_OUT, G1P), jnp.float32),   # hoisted LSTM1 input projections
            pltpu.VMEM((n, C_OUT, H2P), jnp.float32),   # BN3 outputs for the dense head
        ],
    )(patches, wcol, bconv, inv1c, b1aff, wih1p, whh1p, bl1p,
      inv2c, b2aff, w2s, bl2p, inv3c, b3aff, wd3, bd)


# --------------------------------- pure-JAX reference (eval mode) -----------------------------
def reference_forward(x, params):
    (w_conv, b_conv, g1, bt1, m1, v1,
     w_ih1, w_hh1, b_ih1, b_hh1, g2, bt2, m2, v2,
     w_ih2, w_hh2, b_ih2, b_hh2, g3, bt3, m3, v3,
     w_dense, b_dense) = params

    def bn(t, g, b, m, v):  # BatchNorm1d eval, channel axis = 1
        return (t - m[None, :, None]) / jnp.sqrt(v[None, :, None] + EPS) * g[None, :, None] + b[None, :, None]

    y = lax.conv_general_dilated(x, w_conv, window_strides=(STRIDE,), padding='VALID',
                                 dimension_numbers=('NCH', 'OIH', 'NCH'),
                                 precision=lax.Precision.HIGHEST)
    y = y + b_conv[None, :, None]
    y = jnp.maximum(y, 0.0)
    y = bn(y, g1, bt1, m1, v1)
    y = jnp.max(y.reshape(y.shape[0], C_OUT, L2, POOL), axis=-1)             # (N, 40, 45)

    def lstm(seq, wih, whh, bih, bhh, H):
        T, B, _ = seq.shape
        h = jnp.zeros((B, H), jnp.float32)
        c = jnp.zeros((B, H), jnp.float32)
        outs = []
        for t in range(T):
            g = seq[t] @ wih.T + bih + h @ whh.T + bhh
            i = jax.nn.sigmoid(g[:, :H]); f = jax.nn.sigmoid(g[:, H:2 * H])
            gg = jnp.tanh(g[:, 2 * H:3 * H]); o = jax.nn.sigmoid(g[:, 3 * H:])
            c = f * c + i * gg
            h = o * jnp.tanh(c)
            outs.append(h)
        return jnp.stack(outs)

    y = lstm(y, w_ih1, w_hh1, b_ih1, b_hh1, H1)
    y = bn(y, g2, bt2, m2, v2)
    y = lstm(y, w_ih2, w_hh2, b_ih2, b_hh2, H2)
    y = bn(y, g3, bt3, m3, v3)
    y = y.reshape(y.shape[0], C_OUT * H2)
    logits = y @ w_dense.T + b_dense
    return jax.nn.softmax(logits, axis=1)


# --------------------------------------------- main -------------------------------------------
if __name__ == "__main__":
    key = jax.random.PRNGKey(0)
    ks = jax.random.split(key, 25)

    def nrm(k, shape, s=0.1):
        return s * jax.random.normal(k, shape, jnp.float32)

    w_conv = nrm(ks[0], (C_OUT, C_IN, K), 0.05)
    b_conv = nrm(ks[1], (C_OUT,), 0.05)
    g1 = 1.0 + nrm(ks[2], (C_OUT,)); bt1 = nrm(ks[3], (C_OUT,))
    m1 = nrm(ks[4], (C_OUT,)); v1 = jax.random.uniform(ks[5], (C_OUT,), jnp.float32, 0.5, 1.5)
    w_ih1 = nrm(ks[6], (4 * H1, L2)); w_hh1 = nrm(ks[7], (4 * H1, H1))
    b_ih1 = nrm(ks[8], (4 * H1,)); b_hh1 = nrm(ks[9], (4 * H1,))
    g2 = 1.0 + nrm(ks[10], (C_OUT,)); bt2 = nrm(ks[11], (C_OUT,))
    m2 = nrm(ks[12], (C_OUT,)); v2 = jax.random.uniform(ks[13], (C_OUT,), jnp.float32, 0.5, 1.5)
    w_ih2 = nrm(ks[14], (4 * H2, H1)); w_hh2 = nrm(ks[15], (4 * H2, H2))
    b_ih2 = nrm(ks[16], (4 * H2,)); b_hh2 = nrm(ks[17], (4 * H2,))
    g3 = 1.0 + nrm(ks[18], (C_OUT,)); bt3 = nrm(ks[19], (C_OUT,))
    m3 = nrm(ks[20], (C_OUT,)); v3 = jax.random.uniform(ks[21], (C_OUT,), jnp.float32, 0.5, 1.5)
    w_dense = nrm(ks[22], (N_CLASSES, C_OUT * H2), 0.05)
    b_dense = nrm(ks[23], (N_CLASSES,), 0.05)

    params = (w_conv, b_conv, g1, bt1, m1, v1,
              w_ih1, w_hh1, b_ih1, b_hh1, g2, bt2, m2, v2,
              w_ih2, w_hh2, b_ih2, b_hh2, g3, bt3, m3, v3,
              w_dense, b_dense)

    x = jax.random.normal(ks[24], (2, C_IN, L_IN), jnp.float32)   # (N=2, 8, 736), PyTorch NCL

    prepped = prepare_params(params)                              # one-time weight re-layout
    out = jax.block_until_ready(cnn_lstm_forward(x, prepped))
    ref = reference_forward(x, params)

    assert out.shape == (2, N_CLASSES), out.shape
    assert jnp.allclose(out, ref, atol=2e-3, rtol=2e-3), (out, ref)
    print("KERNEL_OK")
</pallas_src>

<mosaic_0001>
module attributes {stable_mosaic.version = 11 : i64} {
  func.func @cnn_lstm_kernel(%arg0: memref<160x360xf32, #tpu.memory_space<vmem>>, %arg1: memref<40x160xf32, #tpu.memory_space<vmem>>, %arg2: memref<40x1xf32, #tpu.memory_space<vmem>>, %arg3: memref<40x1xf32, #tpu.memory_space<vmem>>, %arg4: memref<40x1xf32, #tpu.memory_space<vmem>>, %arg5: memref<45x128xf32, #tpu.memory_space<vmem>>, %arg6: memref<32x128xf32, #tpu.memory_space<vmem>>, %arg7: memref<1x128xf32, #tpu.memory_space<vmem>>, %arg8: memref<40x1xf32, #tpu.memory_space<vmem>>, %arg9: memref<40x1xf32, #tpu.memory_space<vmem>>, %arg10: memref<64x128xf32, #tpu.memory_space<vmem>>, %arg11: memref<1x128xf32, #tpu.memory_space<vmem>>, %arg12: memref<40x1xf32, #tpu.memory_space<vmem>>, %arg13: memref<40x1xf32, #tpu.memory_space<vmem>>, %arg14: memref<2x40x32xf32, #tpu.memory_space<vmem>>, %arg15: memref<1x2xf32, #tpu.memory_space<vmem>>, %arg16: memref<2x2xf32, #tpu.memory_space<vmem>>, %arg17: memref<2x40x128xf32, #tpu.memory_space<vmem>>, %arg18: memref<2x40x32xf32, #tpu.memory_space<vmem>>) attributes {dimension_semantics = [], scalar_prefetch = 0 : i64, scratch_operands = 2 : i64, tpu.core_type = #tpu.core_type<tc>} {
    %c0 = arith.constant 0 : index
    %c0_0 = arith.constant 0 : index
    %0 = vector.load %arg1[%c0, %c0_0] : memref<40x160xf32, #tpu.memory_space<vmem>>, vector<40x160xf32>
    %c0_1 = arith.constant 0 : index
    %c0_2 = arith.constant 0 : index
    %1 = vector.load %arg0[%c0_1, %c0_2] : memref<160x360xf32, #tpu.memory_space<vmem>>, vector<160x360xf32>
    %cst = arith.constant dense<0.000000e+00> : vector<40x360xf32>
    %2 = tpu.matmul %0, %1, %cst {dimension_numbers = #tpu.dot_dimension_numbers<[1], [0], [0], [1], [0, 0, 1, 1], [], []>} : vector<40x160xf32>, vector<160x360xf32>, vector<40x360xf32> -> vector<40x360xf32>
    %c0_3 = arith.constant 0 : index
    %c0_4 = arith.constant 0 : index
    %3 = vector.load %arg2[%c0_3, %c0_4] : memref<40x1xf32, #tpu.memory_space<vmem>>, vector<40x1xf32>
    %4 = vector.broadcast %3 : vector<40x1xf32> to vector<40x360xf32>
    %5 = arith.addf %2, %4 : vector<40x360xf32>
    %cst_5 = arith.constant 0.000000e+00 : f32
    %6 = vector.broadcast %cst_5 : f32 to vector<40x360xf32>
    %7 = arith.maximumf %5, %6 : vector<40x360xf32>
    %c0_6 = arith.constant 0 : index
    %c0_7 = arith.constant 0 : index
    %8 = vector.load %arg3[%c0_6, %c0_7] : memref<40x1xf32, #tpu.memory_space<vmem>>, vector<40x1xf32>
    %9 = vector.broadcast %8 : vector<40x1xf32> to vector<40x360xf32>
    %10 = arith.mulf %7, %9 : vector<40x360xf32>
    %c0_8 = arith.constant 0 : index
    %c0_9 = arith.constant 0 : index
    %11 = vector.load %arg4[%c0_8, %c0_9] : memref<40x1xf32, #tpu.memory_space<vmem>>, vector<40x1xf32>
    %12 = vector.broadcast %11 : vector<40x1xf32> to vector<40x360xf32>
    %13 = arith.addf %10, %12 : vector<40x360xf32>
    %14 = vector.extract_strided_slice %13 {offsets = [0, 0], sizes = [40, 90], strides = [1, 1]} : vector<40x360xf32> to vector<40x90xf32>
    %15 = vector.extract_strided_slice %13 {offsets = [0, 90], sizes = [40, 90], strides = [1, 1]} : vector<40x360xf32> to vector<40x90xf32>
    %16 = arith.maximumf %14, %15 : vector<40x90xf32>
    %17 = vector.extract_strided_slice %13 {offsets = [0, 180], sizes = [40, 90], strides = [1, 1]} : vector<40x360xf32> to vector<40x90xf32>
    %18 = vector.extract_strided_slice %13 {offsets = [0, 270], sizes = [40, 90], strides = [1, 1]} : vector<40x360xf32> to vector<40x90xf32>
    %19 = arith.maximumf %17, %18 : vector<40x90xf32>
    %20 = arith.maximumf %16, %19 : vector<40x90xf32>
    %c0_10 = arith.constant 0 : index
    %c0_11 = arith.constant 0 : index
    %21 = vector.load %arg5[%c0_10, %c0_11] : memref<45x128xf32, #tpu.memory_space<vmem>>, vector<45x128xf32>
    %c0_12 = arith.constant 0 : index
    %c0_13 = arith.constant 0 : index
    %22 = vector.load %arg7[%c0_12, %c0_13] : memref<1x128xf32, #tpu.memory_space<vmem>>, vector<1x128xf32>
    %23 = vector.extract_strided_slice %20 {offsets = [0, 0], sizes = [40, 45], strides = [1, 1]} : vector<40x90xf32> to vector<40x45xf32>
    %cst_14 = arith.constant dense<0.000000e+00> : vector<40x128xf32>
    %24 = tpu.matmul %23, %21, %cst_14 {dimension_numbers = #tpu.dot_dimension_numbers<[1], [0], [0], [1], [0, 0, 1, 1], [], []>} : vector<40x45xf32>, vector<45x128xf32>, vector<40x128xf32> -> vector<40x128xf32>
    %25 = vector.broadcast %22 : vector<1x128xf32> to vector<40x128xf32>
    %26 = arith.addf %24, %25 : vector<40x128xf32>
    %c0_15 = arith.constant 0 : index
    %c0_16 = arith.constant 0 : index
    %c0_17 = arith.constant 0 : index
    %27 = vector.load %arg17[%c0_15, %c0_16, %c0_17] : memref<2x40x128xf32, #tpu.memory_space<vmem>>, vector<1x40x128xf32>
    %28 = vector.shape_cast %27 : vector<1x40x128xf32> to vector<40x128xf32>
    %29 = vector.shape_cast %26 : vector<40x128xf32> to vector<1x40x128xf32>
    tpu.vector_store %arg17[%c0_15, %c0_16, %c0_17], %29 {strides = array<i32>} : memref<2x40x128xf32, #tpu.memory_space<vmem>>, vector<1x40x128xf32>,
    %30 = vector.extract_strided_slice %20 {offsets = [0, 45], sizes = [40, 45], strides = [1, 1]} : vector<40x90xf32> to vector<40x45xf32>
    %cst_18 = arith.constant dense<0.000000e+00> : vector<40x128xf32>
    %31 = tpu.matmul %30, %21, %cst_18 {dimension_numbers = #tpu.dot_dimension_numbers<[1], [0], [0], [1], [0, 0, 1, 1], [], []>} : vector<40x45xf32>, vector<45x128xf32>, vector<40x128xf32> -> vector<40x128xf32>
    %32 = vector.broadcast %22 : vector<1x128xf32> to vector<40x128xf32>
    %33 = arith.addf %31, %32 : vector<40x128xf32>
    %c1 = arith.constant 1 : index
    %c0_19 = arith.constant 0 : index
    %c0_20 = arith.constant 0 : index
    %34 = vector.load %arg17[%c1, %c0_19, %c0_20] : memref<2x40x128xf32, #tpu.memory_space<vmem>>, vector<1x40x128xf32>
    %35 = vector.shape_cast %34 : vector<1x40x128xf32> to vector<40x128xf32>
    %36 = vector.shape_cast %33 : vector<40x128xf32> to vector<1x40x128xf32>
    tpu.vector_store %arg17[%c1, %c0_19, %c0_20], %36 {strides = array<i32>} : memref<2x40x128xf32, #tpu.memory_space<vmem>>, vector<1x40x128xf32>,
    %c0_21 = arith.constant 0 : index
    %c0_22 = arith.constant 0 : index
    %37 = vector.load %arg6[%c0_21, %c0_22] : memref<32x128xf32, #tpu.memory_space<vmem>>, vector<32x128xf32>
    %c0_23 = arith.constant 0 : index
    %c0_24 = arith.constant 0 : index
    %38 = vector.load %arg10[%c0_23, %c0_24] : memref<64x128xf32, #tpu.memory_space<vmem>>, vector<64x128xf32>
    %c0_25 = arith.constant 0 : index
    %c0_26 = arith.constant 0 : index
    %39 = vector.load %arg11[%c0_25, %c0_26] : memref<1x128xf32, #tpu.memory_space<vmem>>, vector<1x128xf32>
    %c0_27 = arith.constant 0 : index
    %c0_28 = arith.constant 0 : index
    %40 = vector.load %arg8[%c0_27, %c0_28] : memref<40x1xf32, #tpu.memory_space<vmem>>, vector<40x1xf32>
    %c0_29 = arith.constant 0 : index
    %c0_30 = arith.constant 0 : index
    %41 = vector.load %arg9[%c0_29, %c0_30] : memref<40x1xf32, #tpu.memory_space<vmem>>, vector<40x1xf32>
    %c0_31 = arith.constant 0 : index
    %c0_32 = arith.constant 0 : index
    %42 = vector.load %arg12[%c0_31, %c0_32] : memref<40x1xf32, #tpu.memory_space<vmem>>, vector<40x1xf32>
    %c0_33 = arith.constant 0 : index
    %c0_34 = arith.constant 0 : index
    %43 = vector.load %arg13[%c0_33, %c0_34] : memref<40x1xf32, #tpu.memory_space<vmem>>, vector<40x1xf32>
    %cst_35 = arith.constant 0.000000e+00 : f32
    %44 = vector.broadcast %cst_35 : f32 to vector<40x32xf32>
    %cst_36 = arith.constant 0.000000e+00 : f32
    %45 = vector.broadcast %cst_36 : f32 to vector<40x32xf32>
    %c0_i32 = arith.constant 0 : i32
    %46 = arith.index_cast %c0_i32 : i32 to index
    %c0_37 = arith.constant 0 : index
    %c0_38 = arith.constant 0 : index
    %47 = vector.load %arg17[%46, %c0_37, %c0_38] : memref<2x40x128xf32, #tpu.memory_space<vmem>>, vector<1x40x128xf32>
    %48 = vector.shape_cast %47 : vector<1x40x128xf32> to vector<40x128xf32>
    %cst_39 = arith.constant dense<0.000000e+00> : vector<40x128xf32>
    %49 = tpu.matmul %44, %37, %cst_39 {dimension_numbers = #tpu.dot_dimension_numbers<[1], [0], [0], [1], [0, 0, 1, 1], [], []>} : vector<40x32xf32>, vector<32x128xf32>, vector<40x128xf32> -> vector<40x128xf32>
    %50 = arith.addf %48, %49 : vector<40x128xf32>
    %51 = vector.extract_strided_slice %50 {offsets = [0, 0], sizes = [40, 32], strides = [1, 1]} : vector<40x128xf32> to vector<40x32xf32>
    %52 = arith.negf %51 : vector<40x32xf32>
    %53 = math.exp %52 : vector<40x32xf32>
    %cst_40 = arith.constant 1.000000e+00 : f32
    %54 = vector.broadcast %cst_40 : f32 to vector<40x32xf32>
    %55 = arith.addf %54, %53 : vector<40x32xf32>
    %56 = arith.divf %54, %55 : vector<40x32xf32>
    %57 = vector.extract_strided_slice %50 {offsets = [0, 32], sizes = [40, 32], strides = [1, 1]} : vector<40x128xf32> to vector<40x32xf32>
    %58 = arith.negf %57 : vector<40x32xf32>
    %59 = math.exp %58 : vector<40x32xf32>
    %cst_41 = arith.constant 1.000000e+00 : f32
    %60 = vector.broadcast %cst_41 : f32 to vector<40x32xf32>
    %61 = arith.addf %60, %59 : vector<40x32xf32>
    %62 = arith.divf %60, %61 : vector<40x32xf32>
    %63 = vector.extract_strided_slice %50 {offsets = [0, 64], sizes = [40, 32], strides = [1, 1]} : vector<40x128xf32> to vector<40x32xf32>
    %64 = math.tanh %63 : vector<40x32xf32>
    %65 = vector.extract_strided_slice %50 {offsets = [0, 96], sizes = [40, 32], strides = [1, 1]} : vector<40x128xf32> to vector<40x32xf32>
    %66 = arith.negf %65 : vector<40x32xf32>
    %67 = math.exp %66 : vector<40x32xf32>
    %cst_42 = arith.constant 1.000000e+00 : f32
    %68 = vector.broadcast %cst_42 : f32 to vector<40x32xf32>
    %69 = arith.addf %68, %67 : vector<40x32xf32>
    %70 = arith.divf %68, %69 : vector<40x32xf32>
    %71 = arith.mulf %62, %44 : vector<40x32xf32>
    %72 = arith.mulf %56, %64 : vector<40x32xf32>
    %73 = arith.addf %71, %72 : vector<40x32xf32>
    %74 = math.tanh %73 : vector<40x32xf32>
    %75 = arith.mulf %70, %74 : vector<40x32xf32>
    %76 = vector.broadcast %40 : vector<40x1xf32> to vector<40x32xf32>
    %77 = arith.mulf %75, %76 : vector<40x32xf32>
    %78 = vector.broadcast %41 : vector<40x1xf32> to vector<40x32xf32>
    %79 = arith.addf %77, %78 : vector<40x32xf32>
    %80 = tpu.concatenate %79, %45 in 1 : vector<40x32xf32>, vector<40x32xf32> -> vector<40x64xf32>
    %cst_43 = arith.constant dense<0.000000e+00> : vector<40x128xf32>
    %81 = tpu.matmul %80, %38, %cst_43 {dimension_numbers = #tpu.dot_dimension_numbers<[1], [0], [0], [1], [0, 0, 1, 1], [], []>} : vector<40x64xf32>, vector<64x128xf32>, vector<40x128xf32> -> vector<40x128xf32>
    %82 = vector.broadcast %39 : vector<1x128xf32> to vector<40x128xf32>
    %83 = arith.addf %81, %82 : vector<40x128xf32>
    %84 = vector.extract_strided_slice %83 {offsets = [0, 0], sizes = [40, 32], strides = [1, 1]} : vector<40x128xf32> to vector<40x32xf32>
    %85 = arith.negf %84 : vector<40x32xf32>
    %86 = math.exp %85 : vector<40x32xf32>
    %cst_44 = arith.constant 1.000000e+00 : f32
    %87 = vector.broadcast %cst_44 : f32 to vector<40x32xf32>
    %88 = arith.addf %87, %86 : vector<40x32xf32>
    %89 = arith.divf %87, %88 : vector<40x32xf32>
    %90 = vector.extract_strided_slice %83 {offsets = [0, 32], sizes = [40, 32], strides = [1, 1]} : vector<40x128xf32> to vector<40x32xf32>
    %91 = arith.negf %90 : vector<40x32xf32>
    %92 = math.exp %91 : vector<40x32xf32>
    %cst_45 = arith.constant 1.000000e+00 : f32
    %93 = vector.broadcast %cst_45 : f32 to vector<40x32xf32>
    %94 = arith.addf %93, %92 : vector<40x32xf32>
    %95 = arith.divf %93, %94 : vector<40x32xf32>
    %96 = vector.extract_strided_slice %83 {offsets = [0, 64], sizes = [40, 32], strides = [1, 1]} : vector<40x128xf32> to vector<40x32xf32>
    %97 = math.tanh %96 : vector<40x32xf32>
    %98 = vector.extract_strided_slice %83 {offsets = [0, 96], sizes = [40, 32], strides = [1, 1]} : vector<40x128xf32> to vector<40x32xf32>
    %99 = arith.negf %98 : vector<40x32xf32>
    %100 = math.exp %99 : vector<40x32xf32>
    %cst_46 = arith.constant 1.000000e+00 : f32
    %101 = vector.broadcast %cst_46 : f32 to vector<40x32xf32>
    %102 = arith.addf %101, %100 : vector<40x32xf32>
    %103 = arith.divf %101, %102 : vector<40x32xf32>
    %104 = arith.mulf %95, %45 : vector<40x32xf32>
    %105 = arith.mulf %89, %97 : vector<40x32xf32>
    %106 = arith.addf %104, %105 : vector<40x32xf32>
    %107 = math.tanh %106 : vector<40x32xf32>
    %108 = arith.mulf %103, %107 : vector<40x32xf32>
    %109 = vector.broadcast %42 : vector<40x1xf32> to vector<40x32xf32>
    %110 = arith.mulf %108, %109 : vector<40x32xf32>
    %111 = vector.broadcast %43 : vector<40x1xf32> to vector<40x32xf32>
    %112 = arith.addf %110, %111 : vector<40x32xf32>
    %113 = arith.index_cast %c0_i32 : i32 to index
    %c0_47 = arith.constant 0 : index
    %c0_48 = arith.constant 0 : index
    %114 = vector.load %arg18[%113, %c0_47, %c0_48] : memref<2x40x32xf32, #tpu.memory_space<vmem>>, vector<1x40x32xf32>
    %115 = vector.shape_cast %114 : vector<1x40x32xf32> to vector<40x32xf32>
    %116 = vector.shape_cast %112 : vector<40x32xf32> to vector<1x40x32xf32>
    tpu.vector_store %arg18[%113, %c0_47, %c0_48], %116 {strides = array<i32>} : memref<2x40x32xf32, #tpu.memory_space<vmem>>, vector<1x40x32xf32>,
    %c1_i32 = arith.constant 1 : i32
    %117 = arith.index_cast %c1_i32 : i32 to index
    %c0_49 = arith.constant 0 : index
    %c0_50 = arith.constant 0 : index
    %118 = vector.load %arg17[%117, %c0_49, %c0_50] : memref<2x40x128xf32, #tpu.memory_space<vmem>>, vector<1x40x128xf32>
    %119 = vector.shape_cast %118 : vector<1x40x128xf32> to vector<40x128xf32>
    %cst_51 = arith.constant dense<0.000000e+00> : vector<40x128xf32>
    %120 = tpu.matmul %75, %37, %cst_51 {dimension_numbers = #tpu.dot_dimension_numbers<[1], [0], [0], [1], [0, 0, 1, 1], [], []>} : vector<40x32xf32>, vector<32x128xf32>, vector<40x128xf32> -> vector<40x128xf32>
    %121 = arith.addf %119, %120 : vector<40x128xf32>
    %122 = vector.extract_strided_slice %121 {offsets = [0, 0], sizes = [40, 32], strides = [1, 1]} : vector<40x128xf32> to vector<40x32xf32>
    %123 = arith.negf %122 : vector<40x32xf32>
    %124 = math.exp %123 : vector<40x32xf32>
    %cst_52 = arith.constant 1.000000e+00 : f32
    %125 = vector.broadcast %cst_52 : f32 to vector<40x32xf32>
    %126 = arith.addf %125, %124 : vector<40x32xf32>
    %127 = arith.divf %125, %126 : vector<40x32xf32>
    %128 = vector.extract_strided_slice %121 {offsets = [0, 32], sizes = [40, 32], strides = [1, 1]} : vector<40x128xf32> to vector<40x32xf32>
    %129 = arith.negf %128 : vector<40x32xf32>
    %130 = math.exp %129 : vector<40x32xf32>
    %cst_53 = arith.constant 1.000000e+00 : f32
    %131 = vector.broadcast %cst_53 : f32 to vector<40x32xf32>
    %132 = arith.addf %131, %130 : vector<40x32xf32>
    %133 = arith.divf %131, %132 : vector<40x32xf32>
    %134 = vector.extract_strided_slice %121 {offsets = [0, 64], sizes = [40, 32], strides = [1, 1]} : vector<40x128xf32> to vector<40x32xf32>
    %135 = math.tanh %134 : vector<40x32xf32>
    %136 = vector.extract_strided_slice %121 {offsets = [0, 96], sizes = [40, 32], strides = [1, 1]} : vector<40x128xf32> to vector<40x32xf32>
    %137 = arith.negf %136 : vector<40x32xf32>
    %138 = math.exp %137 : vector<40x32xf32>
    %cst_54 = arith.constant 1.000000e+00 : f32
    %139 = vector.broadcast %cst_54 : f32 to vector<40x32xf32>
    %140 = arith.addf %139, %138 : vector<40x32xf32>
    %141 = arith.divf %139, %140 : vector<40x32xf32>
    %142 = arith.mulf %133, %73 : vector<40x32xf32>
    %143 = arith.mulf %127, %135 : vector<40x32xf32>
    %144 = arith.addf %142, %143 : vector<40x32xf32>
    %145 = math.tanh %144 : vector<40x32xf32>
    %146 = arith.mulf %141, %145 : vector<40x32xf32>
    %147 = vector.broadcast %40 : vector<40x1xf32> to vector<40x32xf32>
    %148 = arith.mulf %146, %147 : vector<40x32xf32>
    %149 = vector.broadcast %41 : vector<40x1xf32> to vector<40x32xf32>
    %150 = arith.addf %148, %149 : vector<40x32xf32>
    %151 = tpu.concatenate %150, %108 in 1 : vector<40x32xf32>, vector<40x32xf32> -> vector<40x64xf32>
    %cst_55 = arith.constant dense<0.000000e+00> : vector<40x128xf32>
    %152 = tpu.matmul %151, %38, %cst_55 {dimension_numbers = #tpu.dot_dimension_numbers<[1], [0], [0], [1], [0, 0, 1, 1], [], []>} : vector<40x64xf32>, vector<64x128xf32>, vector<40x128xf32> -> vector<40x128xf32>
    %153 = vector.broadcast %39 : vector<1x128xf32> to vector<40x128xf32>
    %154 = arith.addf %152, %153 : vector<40x128xf32>
    %155 = vector.extract_strided_slice %154 {offsets = [0, 0], sizes = [40, 32], strides = [1, 1]} : vector<40x128xf32> to vector<40x32xf32>
    %156 = arith.negf %155 : vector<40x32xf32>
    %157 = math.exp %156 : vector<40x32xf32>
    %cst_56 = arith.constant 1.000000e+00 : f32
    %158 = vector.broadcast %cst_56 : f32 to vector<40x32xf32>
    %159 = arith.addf %158, %157 : vector<40x32xf32>
    %160 = arith.divf %158, %159 : vector<40x32xf32>
    %161 = vector.extract_strided_slice %154 {offsets = [0, 32], sizes = [40, 32], strides = [1, 1]} : vector<40x128xf32> to vector<40x32xf32>
    %162 = arith.negf %161 : vector<40x32xf32>
    %163 = math.exp %162 : vector<40x32xf32>
    %cst_57 = arith.constant 1.000000e+00 : f32
    %164 = vector.broadcast %cst_57 : f32 to vector<40x32xf32>
    %165 = arith.addf %164, %163 : vector<40x32xf32>
    %166 = arith.divf %164, %165 : vector<40x32xf32>
    %167 = vector.extract_strided_slice %154 {offsets = [0, 64], sizes = [40, 32], strides = [1, 1]} : vector<40x128xf32> to vector<40x32xf32>
    %168 = math.tanh %167 : vector<40x32xf32>
    %169 = vector.extract_strided_slice %154 {offsets = [0, 96], sizes = [40, 32], strides = [1, 1]} : vector<40x128xf32> to vector<40x32xf32>
    %170 = arith.negf %169 : vector<40x32xf32>
    %171 = math.exp %170 : vector<40x32xf32>
    %cst_58 = arith.constant 1.000000e+00 : f32
    %172 = vector.broadcast %cst_58 : f32 to vector<40x32xf32>
    %173 = arith.addf %172, %171 : vector<40x32xf32>
    %174 = arith.divf %172, %173 : vector<40x32xf32>
    %175 = arith.mulf %166, %106 : vector<40x32xf32>
    %176 = arith.mulf %160, %168 : vector<40x32xf32>
    %177 = arith.addf %175, %176 : vector<40x32xf32>
    %178 = math.tanh %177 : vector<40x32xf32>
    %179 = arith.mulf %174, %178 : vector<40x32xf32>
    %180 = vector.broadcast %42 : vector<40x1xf32> to vector<40x32xf32>
    %181 = arith.mulf %179, %180 : vector<40x32xf32>
    %182 = vector.broadcast %43 : vector<40x1xf32> to vector<40x32xf32>
    %183 = arith.addf %181, %182 : vector<40x32xf32>
    %184 = arith.index_cast %c1_i32 : i32 to index
    %c0_59 = arith.constant 0 : index
    %c0_60 = arith.constant 0 : index
    %185 = vector.load %arg18[%184, %c0_59, %c0_60] : memref<2x40x32xf32, #tpu.memory_space<vmem>>, vector<1x40x32xf32>
    %186 = vector.shape_cast %185 : vector<1x40x32xf32> to vector<40x32xf32>
    %187 = vector.shape_cast %183 : vector<40x32xf32> to vector<1x40x32xf32>
    tpu.vector_store %arg18[%184, %c0_59, %c0_60], %187 {strides = array<i32>} : memref<2x40x32xf32, #tpu.memory_space<vmem>>, vector<1x40x32xf32>,
    %c2_i32 = arith.constant 2 : i32
    %c0_61 = arith.constant 0 : index
    %c0_62 = arith.constant 0 : index
    %c0_63 = arith.constant 0 : index
    %188 = vector.load %arg18[%c0_61, %c0_62, %c0_63] : memref<2x40x32xf32, #tpu.memory_space<vmem>>, vector<2x40x32xf32>
    %c0_64 = arith.constant 0 : index
    %c0_65 = arith.constant 0 : index
    %c0_66 = arith.constant 0 : index
    %189 = vector.load %arg14[%c0_64, %c0_65, %c0_66] : memref<2x40x32xf32, #tpu.memory_space<vmem>>, vector<1x40x32xf32>
    %190 = vector.shape_cast %189 : vector<1x40x32xf32> to vector<40x32xf32>
    %191 = vector.shape_cast %190 : vector<40x32xf32> to vector<1x40x32xf32>
    %192 = vector.broadcast %191 : vector<1x40x32xf32> to vector<2x40x32xf32>
    %193 = arith.mulf %188, %192 : vector<2x40x32xf32>
    %cst_67 = arith.constant dense<0.000000e+00> : vector<2x40xf32>
    %194 = vector.multi_reduction <add>, %193, %cst_67 [2] : vector<2x40x32xf32> to vector<2x40xf32>
    %cst_68 = arith.constant dense<0.000000e+00> : vector<2xf32>
    %195 = vector.multi_reduction <add>, %194, %cst_68 [1] : vector<2x40xf32> to vector<2xf32>
    %196 = vector.shape_cast %195 : vector<2xf32> to vector<2x1xf32>
    %c1_69 = arith.constant 1 : index
    %c0_70 = arith.constant 0 : index
    %c0_71 = arith.constant 0 : index
    %197 = vector.load %arg14[%c1_69, %c0_70, %c0_71] : memref<2x40x32xf32, #tpu.memory_space<vmem>>, vector<1x40x32xf32>
    %198 = vector.shape_cast %197 : vector<1x40x32xf32> to vector<40x32xf32>
    %199 = vector.shape_cast %198 : vector<40x32xf32> to vector<1x40x32xf32>
    %200 = vector.broadcast %199 : vector<1x40x32xf32> to vector<2x40x32xf32>
    %201 = arith.mulf %188, %200 : vector<2x40x32xf32>
    %cst_72 = arith.constant dense<0.000000e+00> : vector<2x40xf32>
    %202 = vector.multi_reduction <add>, %201, %cst_72 [2] : vector<2x40x32xf32> to vector<2x40xf32>
    %cst_73 = arith.constant dense<0.000000e+00> : vector<2xf32>
    %203 = vector.multi_reduction <add>, %202, %cst_73 [1] : vector<2x40xf32> to vector<2xf32>
    %204 = vector.shape_cast %203 : vector<2xf32> to vector<2x1xf32>
    %205 = tpu.concatenate %196, %204 in 1 : vector<2x1xf32>, vector<2x1xf32> -> vector<2x2xf32>
    %c0_74 = arith.constant 0 : index
    %c0_75 = arith.constant 0 : index
    %206 = vector.load %arg15[%c0_74, %c0_75] : memref<1x2xf32, #tpu.memory_space<vmem>>, vector<1x2xf32>
    %207 = vector.broadcast %206 : vector<1x2xf32> to vector<2x2xf32>
    %208 = arith.addf %205, %207 : vector<2x2xf32>
    %cst_76 = arith.constant dense<0xFF800000> : vector<2xf32>
    %209 = vector.multi_reduction <maximumf>, %208, %cst_76 [1] : vector<2x2xf32> to vector<2xf32>
    %210 = vector.shape_cast %209 : vector<2xf32> to vector<2x1xf32>
    %211 = vector.broadcast %210 : vector<2x1xf32> to vector<2x2xf32>
    %212 = arith.subf %208, %211 : vector<2x2xf32>
    %213 = math.exp %212 : vector<2x2xf32>
    %cst_77 = arith.constant dense<0.000000e+00> : vector<2xf32>
    %214 = vector.multi_reduction <add>, %213, %cst_77 [1] : vector<2x2xf32> to vector<2xf32>
    %215 = vector.shape_cast %214 : vector<2xf32> to vector<2x1xf32>
    %216 = tpu.reciprocal %215 {approx = true} : vector<2x1xf32> -> vector<2x1xf32>
    %217 = vector.broadcast %216 : vector<2x1xf32> to vector<2x2xf32>
    %218 = arith.mulf %213, %217 : vector<2x2xf32>
    %c0_78 = arith.constant 0 : index
    %c0_79 = arith.constant 0 : index
    %219 = vector.load %arg16[%c0_78, %c0_79] : memref<2x2xf32, #tpu.memory_space<vmem>>, vector<2x2xf32>
    tpu.vector_store %arg16[%c0_78, %c0_79], %218 {strides = array<i32>} : memref<2x2xf32, #tpu.memory_space<vmem>>, vector<2x2xf32>,
    return
  }
}

</mosaic_0001>

<llo_original>
// kernel: cnn_lstm_forward.1
$region0: #{cnn_lstm_forward.1}
  #allocation0 [shape = 'u32[]', space=smem, size = 0x4, offset = 0x4, fixed_abs, tag = 'smem constant byte address 0x4 - core index']
  #allocation1 [shape = 'u32[144,128]{1,0:T(1,128)}', space=vmem, size = 0x12000, scoped, tag = 'internal scratch']
  #allocation2 [shape = 'f32[2,40,128]{2,1,0:T(8,128)}', space=vmem, size = 0xa000, scoped, tag = 'scratch operand']
  #allocation3 [shape = 'f32[2,40,32]{2,1,0:T(8,128)}', space=vmem, size = 0xa000, scoped, tag = 'scratch operand']
  %s0 = inlined_call_operand.vmem [shape: f32[160,360], index: 0, kind: input, shape index: {}]
  %s1 = inlined_call_operand.vmem [shape: f32[40,160], index: 1, kind: input, shape index: {}]
  %s2 = inlined_call_operand.vmem [shape: f32[40,1], index: 2, kind: input, shape index: {}]
  %s3 = inlined_call_operand.vmem [shape: f32[40,1], index: 3, kind: input, shape index: {}]
  %s4 = inlined_call_operand.vmem [shape: f32[40,1], index: 4, kind: input, shape index: {}]
  %s5 = inlined_call_operand.vmem [shape: f32[45,128], index: 5, kind: input, shape index: {}]
  %s6 = inlined_call_operand.vmem [shape: f32[32,128], index: 6, kind: input, shape index: {}]
  %s7 = inlined_call_operand.vmem [shape: f32[1,128], index: 7, kind: input, shape index: {}]
  %s8 = inlined_call_operand.vmem [shape: f32[40,1], index: 8, kind: input, shape index: {}]
  %s9 = inlined_call_operand.vmem [shape: f32[40,1], index: 9, kind: input, shape index: {}]
  %s10 = inlined_call_operand.vmem [shape: f32[64,128], index: 10, kind: input, shape index: {}]
  %s11 = inlined_call_operand.vmem [shape: f32[1,128], index: 11, kind: input, shape index: {}]
  %s12 = inlined_call_operand.vmem [shape: f32[40,1], index: 12, kind: input, shape index: {}]
  %s13 = inlined_call_operand.vmem [shape: f32[40,1], index: 13, kind: input, shape index: {}]
  %s14 = inlined_call_operand.vmem [shape: f32[2,40,32], index: 14, kind: input, shape index: {}]
  %s15 = inlined_call_operand.vmem [shape: f32[1,2], index: 15, kind: input, shape index: {}]
  %s16 = inlined_call_operand.hbm [shape: f32[2,2], index: 16, kind: output, shape index: {}]
  %s17 = sld [smem:[#allocation0]]
  $region74: #{cnn_lstm_forward.1} parent=0
    _
  %s19 = ssub.s32 1, %s17
  %s20 = scalar_select 0, %s19, %s17
  $region1: #{cnn_lstm_forward.1} parent=0
    #allocation4 [shape = 'u8[1024]{0}', space=vmem, size = 0x400, scoped, tag = 'output window, operand 0, single buffered']
    #allocation5 [shape = 's32[1]{0}', space=sflag, size = 0x4, scoped, tag = 'scoped memory for cnn_lstm_forward.1']
    %21 = vsyncpa [#allocation5], 0
    // Predicated region
    $region2: #{cnn_lstm_forward.1} parent=1 // pred_check
      _
    $region3: #{cnn_lstm_forward.1} parent=1 // pred_check_branch
      %23 = sbr.rel (0) target = $region5
    $region4: #{cnn_lstm_forward.1} parent=1 // pred_region
      _
    $region5: #{cnn_lstm_forward.1} parent=1 // pred_fallthru
      _
    // Predicated region
    $region6: #{cnn_lstm_forward.1} parent=1 // pred_check
      _
    $region7: #{cnn_lstm_forward.1} parent=1 // pred_check_branch
      %25 = sbr.rel (0) target = $region9
    $region8: #{cnn_lstm_forward.1} parent=1 // pred_region
      _
    $region9: #{cnn_lstm_forward.1} parent=1 // pred_fallthru
      _
    // Predicated region
    $region10: #{cnn_lstm_forward.1} parent=1 // pred_check
      _
    $region11: #{cnn_lstm_forward.1} parent=1 // pred_check_branch
      %27 = sbr.rel (0) target = $region13
    $region12: #{cnn_lstm_forward.1} parent=1 // pred_region
      _
    $region13: #{cnn_lstm_forward.1} parent=1 // pred_fallthru
      _
    // Predicated region
    $region14: #{cnn_lstm_forward.1} parent=1 // pred_check
      _
    $region15: #{cnn_lstm_forward.1} parent=1 // pred_check_branch
      %29 = sbr.rel (0) target = $region17
    $region16: #{cnn_lstm_forward.1} parent=1 // pred_region
      _
    $region17: #{cnn_lstm_forward.1} parent=1 // pred_fallthru
      _
    // Predicated region
    $region18: #{cnn_lstm_forward.1} parent=1 // pred_check
      _
    $region19: #{cnn_lstm_forward.1} parent=1 // pred_check_branch
      %31 = sbr.rel (0) target = $region21
    $region20: #{cnn_lstm_forward.1} parent=1 // pred_region
      _
    $region21: #{cnn_lstm_forward.1} parent=1 // pred_fallthru
      _
    // Predicated region
    $region22: #{cnn_lstm_forward.1} parent=1 // pred_check
      _
    $region23: #{cnn_lstm_forward.1} parent=1 // pred_check_branch
      %33 = sbr.rel (0) target = $region25
    $region24: #{cnn_lstm_forward.1} parent=1 // pred_region
      _
    $region25: #{cnn_lstm_forward.1} parent=1 // pred_fallthru
      _
    // Predicated region
    $region26: #{cnn_lstm_forward.1} parent=1 // pred_check
      _
    $region27: #{cnn_lstm_forward.1} parent=1 // pred_check_branch
      %35 = sbr.rel (0) target = $region29
    $region28: #{cnn_lstm_forward.1} parent=1 // pred_region
      _
    $region29: #{cnn_lstm_forward.1} parent=1 // pred_fallthru
      _
    // Predicated region
    $region30: #{cnn_lstm_forward.1} parent=1 // pred_check
      _
    $region31: #{cnn_lstm_forward.1} parent=1 // pred_check_branch
      %37 = sbr.rel (0) target = $region33
    $region32: #{cnn_lstm_forward.1} parent=1 // pred_region
      _
    $region33: #{cnn_lstm_forward.1} parent=1 // pred_fallthru
      _
    // Predicated region
    $region34: #{cnn_lstm_forward.1} parent=1 // pred_check
      _
    $region35: #{cnn_lstm_forward.1} parent=1 // pred_check_branch
      %39 = sbr.rel (0) target = $region37
    $region36: #{cnn_lstm_forward.1} parent=1 // pred_region
      _
    $region37: #{cnn_lstm_forward.1} parent=1 // pred_fallthru
      _
    // Predicated region
    $region38: #{cnn_lstm_forward.1} parent=1 // pred_check
      _
    $region39: #{cnn_lstm_forward.1} parent=1 // pred_check_branch
      %41 = sbr.rel (0) target = $region41
    $region40: #{cnn_lstm_forward.1} parent=1 // pred_region
      _
    $region41: #{cnn_lstm_forward.1} parent=1 // pred_fallthru
      _
    // Predicated region
    $region42: #{cnn_lstm_forward.1} parent=1 // pred_check
      _
    $region43: #{cnn_lstm_forward.1} parent=1 // pred_check_branch
      %43 = sbr.rel (0) target = $region45
    $region44: #{cnn_lstm_forward.1} parent=1 // pred_region
      _
    $region45: #{cnn_lstm_forward.1} parent=1 // pred_fallthru
      _
    // Predicated region
    $region46: #{cnn_lstm_forward.1} parent=1 // pred_check
      _
    $region47: #{cnn_lstm_forward.1} parent=1 // pred_check_branch
      %45 = sbr.rel (0) target = $region49
    $region48: #{cnn_lstm_forward.1} parent=1 // pred_region
      _
    $region49: #{cnn_lstm_forward.1} parent=1 // pred_fallthru
      _
    // Predicated region
    $region50: #{cnn_lstm_forward.1} parent=1 // pred_check
      _
    $region51: #{cnn_lstm_forward.1} parent=1 // pred_check_branch
      %47 = sbr.rel (0) target = $region53
    $region52: #{cnn_lstm_forward.1} parent=1 // pred_region
      _
    $region53: #{cnn_lstm_forward.1} parent=1 // pred_fallthru
      _
    // Predicated region
    $region54: #{cnn_lstm_forward.1} parent=1 // pred_check
      _
    $region55: #{cnn_lstm_forward.1} parent=1 // pred_check_branch
      %49 = sbr.rel (0) target = $region57
    $region56: #{cnn_lstm_forward.1} parent=1 // pred_region
      _
    $region57: #{cnn_lstm_forward.1} parent=1 // pred_fallthru
      _
    // Predicated region
    $region58: #{cnn_lstm_forward.1} parent=1 // pred_check
      _
    $region59: #{cnn_lstm_forward.1} parent=1 // pred_check_branch
      %51 = sbr.rel (0) target = $region61
    $region60: #{cnn_lstm_forward.1} parent=1 // pred_region
      _
    $region61: #{cnn_lstm_forward.1} parent=1 // pred_fallthru
      _
    // Predicated region
    $region62: #{cnn_lstm_forward.1} parent=1 // pred_check
      _
    $region63: #{cnn_lstm_forward.1} parent=1 // pred_check_branch
      %53 = sbr.rel (0) target = $region65
    $region64: #{cnn_lstm_forward.1} parent=1 // pred_region
      _
    $region65: #{cnn_lstm_forward.1} parent=1 // pred_fallthru
      _
    %v54 = vld [vmem:[%s1] sm:$0xff]
    %v55 = vld [vmem:[%s1 + $0x8] sm:$0xff]
    %v56 = vld [vmem:[%s1 + $0x10] sm:$0xff]
    %v57 = vld [vmem:[%s1 + $0x18] sm:$0xff]
    %v58 = vld [vmem:[%s1 + $0x20] sm:$0xff]
    %v59 = vld [vmem:[%s1 + $0x28] sm:$0xff]
    %v60 = vld [vmem:[%s1 + $0x30] sm:$0xff]
    %v61 = vld [vmem:[%s1 + $0x38] sm:$0xff]
    %v62 = vld [vmem:[%s1 + $0x40] sm:$0xff]
    %v63 = vld [vmem:[%s1 + $0x48] sm:$0xff]
    %v64 = vld [vmem:[%s0] sm:$0xff]
    %v65 = vld [vmem:[%s0 + $0x8] sm:$0xff]
    %v66 = vld [vmem:[%s0 + $0x10] sm:$0xff]
    %v67 = vld [vmem:[%s0 + $0x18] sm:$0xff]
    %v68 = vld [vmem:[%s0 + $0x20] sm:$0xff]
    %v69 = vld [vmem:[%s0 + $0x28] sm:$0xff]
    %v70 = vld [vmem:[%s0 + $0x30] sm:$0xff]
    %v71 = vld [vmem:[%s0 + $0x38] sm:$0xff]
    %v72 = vld [vmem:[%s0 + $0x40] sm:$0xff]
    %v73 = vld [vmem:[%s0 + $0x48] sm:$0xff]
    %v74 = vld [vmem:[%s0 + $0x50] sm:$0xff]
    %v75 = vld [vmem:[%s0 + $0x58] sm:$0xff]
    %v76 = vld [vmem:[%s0 + $0x60] sm:$0xff]
    %v77 = vld [vmem:[%s0 + $0x68] sm:$0xff]
    %v78 = vld [vmem:[%s0 + $0x70] sm:$0xff]
    %v79 = vld [vmem:[%s0 + $0x78] sm:$0xff]
    %v80 = vld [vmem:[%s0 + $0x80] sm:$0xff]
    %v81 = vld [vmem:[%s0 + $0x88] sm:$0xff]
    %v82 = vld [vmem:[%s0 + $0x90] sm:$0xff]
    %v83 = vld [vmem:[%s0 + $0x98] sm:$0xff]
    %v84 = vld [vmem:[%s0 + $0xa0] sm:$0xff]
    %v85 = vld [vmem:[%s0 + $0xa8] sm:$0xff]
    %v86 = vld [vmem:[%s0 + $0xb0] sm:$0xff]
    %v87 = vld [vmem:[%s0 + $0xb8] sm:$0xff]
    %v88 = vld [vmem:[%s0 + $0xc0] sm:$0xff]
    %v89 = vld [vmem:[%s0 + $0xc8] sm:$0xff]
    %v90 = vld [vmem:[%s0 + $0xd0] sm:$0xff]
    %v91 = vld [vmem:[%s0 + $0xd8] sm:$0xff]
    %v92 = vld [vmem:[%s0 + $0xe0] sm:$0xff]
    %v93 = vld [vmem:[%s0 + $0xe8] sm:$0xff]
    %v94 = vld [vmem:[%s0 + $0xf0] sm:$0xff]
    %v95 = vld [vmem:[%s0 + $0xf8] sm:$0xff]
    %v96 = vld [vmem:[%s0 + $0x100] sm:$0xff]
    %v97 = vld [vmem:[%s0 + $0x108] sm:$0xff]
    %v98 = vld [vmem:[%s0 + $0x110] sm:$0xff]
    %v99 = vld [vmem:[%s0 + $0x118] sm:$0xff]
    %v100 = vld [vmem:[%s0 + $0x120] sm:$0xff]
    %v101 = vld [vmem:[%s0 + $0x128] sm:$0xff]
    %v102 = vld [vmem:[%s0 + $0x130] sm:$0xff]
    %v103 = vld [vmem:[%s0 + $0x138] sm:$0xff]
    %v104 = vld [vmem:[%s0 + $0x140] sm:$0xff]
    %v105 = vld [vmem:[%s0 + $0x148] sm:$0xff]
    %v106 = vld [vmem:[%s0 + $0x150] sm:$0xff]
    %v107 = vld [vmem:[%s0 + $0x158] sm:$0xff]
    %v108 = vld [vmem:[%s0 + $0x160] sm:$0xff]
    %v109 = vld [vmem:[%s0 + $0x168] sm:$0xff]
    %v110 = vld [vmem:[%s0 + $0x170] sm:$0xff]
    %v111 = vld [vmem:[%s0 + $0x178] sm:$0xff]
    %v112 = vld [vmem:[%s0 + $0x180] sm:$0xff]
    %v113 = vld [vmem:[%s0 + $0x188] sm:$0xff]
    %v114 = vld [vmem:[%s0 + $0x190] sm:$0xff]
    %v115 = vld [vmem:[%s0 + $0x198] sm:$0xff]
    %v116 = vld [vmem:[%s0 + $0x1a0] sm:$0xff]
    %v117 = vld [vmem:[%s0 + $0x1a8] sm:$0xff]
    %v118 = vld [vmem:[%s0 + $0x1b0] sm:$0xff]
    %v119 = vld [vmem:[%s0 + $0x1b8] sm:$0xff]
    %v120 = vld [vmem:[%s0 + $0x1c0] sm:$0xff]
    %v121 = vld [vmem:[%s0 + $0x1c8] sm:$0xff]
    %v122 = vld [vmem:[%s0 + $0x1d0] sm:$0xff]
    %v123 = vld [vmem:[%s0 + $0x1d8] sm:$0xff]
    %v124 = vld [vmem:[%s2] sm:$0xff]
    %v125 = vld [vmem:[%s2 + $0x8] sm:$0xff]
    %v126 = vld [vmem:[%s2 + $0x10] sm:$0xff]
    %v127 = vld [vmem:[%s2 + $0x18] sm:$0xff]
    %v128 = vld [vmem:[%s2 + $0x20] sm:$0xff]
    %130 = vset.pattern.permute.xlu0 0
    %131 = vperm.xlu0 %130, %v124
    %v132 = vpop.permute.xlu0 %131
    %135 = vset.pattern.permute.xlu0 0
    %136 = vperm.xlu0 %135, %v125
    %v137 = vpop.permute.xlu0 %136
    %140 = vset.pattern.permute.xlu0 0
    %141 = vperm.xlu0 %140, %v126
    %v142 = vpop.permute.xlu0 %141
    %145 = vset.pattern.permute.xlu0 0
    %146 = vperm.xlu0 %145, %v127
    %v147 = vpop.permute.xlu0 %146
    %150 = vset.pattern.permute.xlu0 0
    %151 = vperm.xlu0 %150, %v128
    %v152 = vpop.permute.xlu0 %151
    %vm154 = vcmask 261120
    %v156 = vsel %vm154, %v55, 0
    %v159 = vsel %vm154, %v57, 0
    %v162 = vsel %vm154, %v59, 0
    %v165 = vsel %vm154, %v61, 0
    %v168 = vsel %vm154, %v63, 0
    %170 = vmatprep.subr.mxu0 %v65
    %171 = vmatpush1.msra.mxu0 %v64
    %172 = vmatprep.subr.mxu0 %v68
    %173 = vmatpush1.msra.mxu0 %v67
    %174 = vmatprep.subr.mxu0 %v71
    %175 = vmatpush1.msra.mxu0 %v70
    %176 = vmatprep.subr.mxu0 %v74
    %177 = vmatpush1.msra.mxu0 %v73
    %178 = vmatprep.subr.mxu0 %v77
    %179 = vmatpush1.msra.mxu0 %v76
    %180 = vmatprep.subr.mxu0 %v80
    %181 = vmatpush1.msra.mxu0 %v79
    %182 = vmatprep.subr.mxu0 %v83
    %183 = vmatpush1.msra.mxu0 %v82
    %184 = vmatprep.subr.mxu0 %v86
    %185 = vmatpush1.msra.mxu0 %v85
    %186 = vmatprep.subr.mxu0 %v89
    %187 = vmatpush1.msra.mxu0 %v88
    %188 = vmatprep.subr.mxu0 %v92
    %189 = vmatpush1.msra.mxu0 %v91
    %190 = vmatprep.subr.mxu0 %v95
    %191 = vmatpush1.msra.mxu0 %v94
    %192 = vmatprep.subr.mxu0 %v98
    %193 = vmatpush1.msra.mxu0 %v97
    %194 = vmatprep.subr.mxu0 %v101
    %195 = vmatpush1.msra.mxu0 %v100
    %196 = vmatprep.subr.mxu0 %v104
    %197 = vmatpush1.msra.mxu0 %v103
    %198 = vmatprep.subr.mxu0 %v107
    %199 = vmatpush1.msra.mxu0 %v106
    %200 = vmatprep.subr.mxu0 %v110
    %201 = vmatpush1.msra.mxu0 %v109
    %202 = vmatprep.subr.mxu0 %v113
    %203 = vmatpush1.msra.mxu0 %v112
    %204 = vmatprep.subr.mxu0 %v116
    %205 = vmatpush1.msra.mxu0 %v115
    %206 = vmatprep.subr.mxu0 %v119
    %207 = vmatpush1.msra.mxu0 %v118
    %208 = vmatprep.subr.mxu0 %v122
    %209 = vmatpush1.msra.mxu0 %v121
    %210 = vmatprep.subr.mxu0 0.0
    %211 = vmatpush1.msra.mxu0 0.0
    %212 = vmatprep.subr.mxu0 0.0
    %213 = vmatpush1.msra.mxu0 0.0
    %214 = vmatprep.subr.mxu0 0.0
    %215 = vmatpush1.msra.mxu0 0.0
    %216 = vmatprep.subr.mxu0 0.0
    %217 = vmatpush1.msra.mxu0 0.0
    %218 = vmatprep.subr.mxu0 0.0
    %219 = vmatpush1.msra.mxu0 0.0
    %220 = vmatprep.subr.mxu0 0.0
    %221 = vmatpush1.msra.mxu0 0.0
    %222 = vmatprep.subr.mxu0 0.0
    %223 = vmatpush1.msra.mxu0 0.0
    %224 = vmatprep.subr.mxu0 0.0
    %225 = vmatpush1.msra.mxu0 0.0
    %226 = vmatprep.subr.mxu0 0.0
    %227 = vmatpush1.msra.mxu0 0.0
    %228 = vmatprep.subr.mxu0 0.0
    %229 = vmatpush1.msra.mxu0 0.0
    %230 = vmatprep.subr.mxu0 0.0
    %231 = vmatpush1.msra.mxu0 0.0
    %232 = vmatprep.subr.mxu0 0.0
    %233 = vmatpush1.msra.mxu0 0.0
    %234 = vmatprep.mubr.f32.mxu0 %v156
    %235 = vmatmul.mubr.f32.gmra.mrb[0].mxu0 %v54
    %v236 = vpop.f32.mrb[0].mxu0
    %v237 = vadd.f32 %v132, %v236
    %v238 = vpop.f32.mrb[0].mxu0
    %v239 = vadd.f32 %v132, %v238
    %240 = vmatprep.mubr.f32.mxu0 %v159
    %241 = vmatmul.mubr.f32.gmra.mrb[0].mxu0 %v56
    %v242 = vpop.f32.mrb[0].mxu0
    %v243 = vadd.f32 %v137, %v242
    %v244 = vpop.f32.mrb[0].mxu0
    %v245 = vadd.f32 %v137, %v244
    %246 = vmatprep.mubr.f32.mxu0 %v162
    %247 = vmatmul.mubr.f32.gmra.mrb[0].mxu0 %v58
    %v248 = vpop.f32.mrb[0].mxu0
    %v249 = vadd.f32 %v142, %v248
    %v250 = vpop.f32.mrb[0].mxu0
    %v251 = vadd.f32 %v142, %v250
    %252 = vmatprep.mubr.f32.mxu0 %v165
    %253 = vmatmul.mubr.f32.gmra.mrb[0].mxu0 %v60
    %v254 = vpop.f32.mrb[0].mxu0
    %v255 = vadd.f32 %v147, %v254
    %v256 = vpop.f32.mrb[0].mxu0
    %v257 = vadd.f32 %v147, %v256
    %258 = vmatprep.mubr.f32.mxu0 %v168
    %259 = vmatmul.mubr.f32.gmra.mrb[0].mxu0 %v62
    %v260 = vpop.f32.mrb[0].mxu0
    %v261 = vadd.f32 %v152, %v260
    %v262 = vpop.f32.mrb[0].mxu0
    %v263 = vadd.f32 %v152, %v262
    %264 = vdwg.mxu0
    %265 = vmatprep.subr.mxu0 0.0
    %266 = vmatpush1.msra.mxu0 %v66
    %267 = vmatprep.subr.mxu0 0.0
    %268 = vmatpush1.msra.mxu0 %v69
    %269 = vmatprep.subr.mxu0 0.0
    %270 = vmatpush1.msra.mxu0 %v72
    %271 = vmatprep.subr.mxu0 0.0
    %272 = vmatpush1.msra.mxu0 %v75
    %273 = vmatprep.subr.mxu0 0.0
    %274 = vmatpush1.msra.mxu0 %v78
    %275 = vmatprep.subr.mxu0 0.0
    %276 = vmatpush1.msra.mxu0 %v81
    %277 = vmatprep.subr.mxu0 0.0
    %278 = vmatpush1.msra.mxu0 %v84
    %279 = vmatprep.subr.mxu0 0.0
    %280 = vmatpush1.msra.mxu0 %v87
    %281 = vmatprep.subr.mxu0 0.0
    %282 = vmatpush1.msra.mxu0 %v90
    %283 = vmatprep.subr.mxu0 0.0
    %284 = vmatpush1.msra.mxu0 %v93
    %285 = vmatprep.subr.mxu0 0.0
    %286 = vmatpush1.msra.mxu0 %v96
    %287 = vmatprep.subr.mxu0 0.0
    %288 = vmatpush1.msra.mxu0 %v99
    %289 = vmatprep.subr.mxu0 0.0
    %290 = vmatpush1.msra.mxu0 %v102
    %291 = vmatprep.subr.mxu0 0.0
    %292 = vmatpush1.msra.mxu0 %v105
    %293 = vmatprep.subr.mxu0 0.0
    %294 = vmatpush1.msra.mxu0 %v108
    %295 = vmatprep.subr.mxu0 0.0
    %296 = vmatpush1.msra.mxu0 %v111
    %297 = vmatprep.subr.mxu0 0.0
    %298 = vmatpush1.msra.mxu0 %v114
    %299 = vmatprep.subr.mxu0 0.0
    %300 = vmatpush1.msra.mxu0 %v117
    %301 = vmatprep.subr.mxu0 0.0
    %302 = vmatpush1.msra.mxu0 %v120
    %303 = vmatprep.subr.mxu0 0.0
    %304 = vmatpush1.msra.mxu0 %v123
    %305 = vmatprep.subr.mxu0 0.0
    %306 = vmatpush1.msra.mxu0 0.0
    %307 = vmatprep.subr.mxu0 0.0
    %308 = vmatpush1.msra.mxu0 0.0
    %309 = vmatprep.subr.mxu0 0.0
    %310 = vmatpush1.msra.mxu0 0.0
    %311 = vmatprep.subr.mxu0 0.0
    %312 = vmatpush1.msra.mxu0 0.0
    %313 = vmatprep.subr.mxu0 0.0
    %314 = vmatpush1.msra.mxu0 0.0
    %315 = vmatprep.subr.mxu0 0.0
    %316 = vmatpush1.msra.mxu0 0.0
    %317 = vmatprep.subr.mxu0 0.0
    %318 = vmatpush1.msra.mxu0 0.0
    %319 = vmatprep.subr.mxu0 0.0
    %320 = vmatpush1.msra.mxu0 0.0
    %321 = vmatprep.subr.mxu0 0.0
    %322 = vmatpush1.msra.mxu0 0.0
    %323 = vmatprep.subr.mxu0 0.0
    %324 = vmatpush1.msra.mxu0 0.0
    %325 = vmatprep.subr.mxu0 0.0
    %326 = vmatpush1.msra.mxu0 0.0
    %327 = vmatprep.subr.mxu0 0.0
    %328 = vmatpush1.msra.mxu0 0.0
    %329 = vmatprep.mubr.f32.mxu0 %v156
    %330 = vmatmul.mubr.f32.gmra.mrb[0].mxu0 %v54
    %v331 = vpop.f32.mrb[0].mxu0
    %v332 = vadd.f32 %v132, %v331
    %v333 = vpop.f32.mrb[0].mxu0
    %334 = vmatprep.mubr.f32.mxu0 %v159
    %335 = vmatmul.mubr.f32.gmra.mrb[0].mxu0 %v56
    %v336 = vpop.f32.mrb[0].mxu0
    %v337 = vadd.f32 %v137, %v336
    %v338 = vpop.f32.mrb[0].mxu0
    %339 = vmatprep.mubr.f32.mxu0 %v162
    %340 = vmatmul.mubr.f32.gmra.mrb[0].mxu0 %v58
    %v341 = vpop.f32.mrb[0].mxu0
    %v342 = vadd.f32 %v142, %v341
    %v343 = vpop.f32.mrb[0].mxu0
    %344 = vmatprep.mubr.f32.mxu0 %v165
    %345 = vmatmul.mubr.f32.gmra.mrb[0].mxu0 %v60
    %v346 = vpop.f32.mrb[0].mxu0
    %v347 = vadd.f32 %v147, %v346
    %v348 = vpop.f32.mrb[0].mxu0
    %349 = vmatprep.mubr.f32.mxu0 %v168
    %350 = vmatmul.mubr.f32.gmra.mrb[0].mxu0 %v62
    %v351 = vpop.f32.mrb[0].mxu0
    %v352 = vadd.f32 %v152, %v351
    %v353 = vpop.f32.mrb[0].mxu0
    %354 = vdwg.mxu0
    %v355 = vmax.f32 %v237, 0.0
    %v356 = vmax.f32 %v239, 0.0
    %v357 = vmax.f32 %v332, 0.0
    %v358 = vmax.f32 %v243, 0.0
    %v359 = vmax.f32 %v245, 0.0
    %v360 = vmax.f32 %v337, 0.0
    %v361 = vmax.f32 %v249, 0.0
    %v362 = vmax.f32 %v251, 0.0
    %v363 = vmax.f32 %v342, 0.0
    %v364 = vmax.f32 %v255, 0.0
    %v365 = vmax.f32 %v257, 0.0
    %v366 = vmax.f32 %v347, 0.0
    %v367 = vmax.f32 %v261, 0.0
    %v368 = vmax.f32 %v263, 0.0
    %v369 = vmax.f32 %v352, 0.0
    %v370 = vld [vmem:[%s3] sm:$0xff]
    %v371 = vld [vmem:[%s3 + $0x8] sm:$0xff]
    %v372 = vld [vmem:[%s3 + $0x10] sm:$0xff]
    %v373 = vld [vmem:[%s3 + $0x18] sm:$0xff]
    %v374 = vld [vmem:[%s3 + $0x20] sm:$0xff]
    %376 = vset.pattern.permute.xlu0 0
    %377 = vperm.xlu0 %376, %v370
    %v378 = vpop.permute.xlu0 %377
    %381 = vset.pattern.permute.xlu0 0
    %382 = vperm.xlu0 %381, %v371
    %v383 = vpop.permute.xlu0 %382
    %386 = vset.pattern.permute.xlu0 0
    %387 = vperm.xlu0 %386, %v372
    %v388 = vpop.permute.xlu0 %387
    %391 = vset.pattern.permute.xlu0 0
    %392 = vperm.xlu0 %391, %v373
    %v393 = vpop.permute.xlu0 %392
    %396 = vset.pattern.permute.xlu0 0
    %397 = vperm.xlu0 %396, %v374
    %v398 = vpop.permute.xlu0 %397
    %v400 = vmul.f32 %v355, %v378
    %v401 = vmul.f32 %v356, %v378
    %v402 = vmul.f32 %v357, %v378
    %v403 = vmul.f32 %v358, %v383
    %v404 = vmul.f32 %v359, %v383
    %v405 = vmul.f32 %v360, %v383
    %v406 = vmul.f32 %v361, %v388
    %v407 = vmul.f32 %v362, %v388
    %v408 = vmul.f32 %v363, %v388
    %v409 = vmul.f32 %v364, %v393
    %v410 = vmul.f32 %v365, %v393
    %v411 = vmul.f32 %v366, %v393
    %v412 = vmul.f32 %v367, %v398
    %v413 = vmul.f32 %v368, %v398
    %v414 = vmul.f32 %v369, %v398
    %v415 = vld [vmem:[%s4] sm:$0xff]
    %v416 = vld [vmem:[%s4 + $0x8] sm:$0xff]
    %v417 = vld [vmem:[%s4 + $0x10] sm:$0xff]
    %v418 = vld [vmem:[%s4 + $0x18] sm:$0xff]
    %v419 = vld [vmem:[%s4 + $0x20] sm:$0xff]
    %421 = vset.pattern.permute.xlu0 0
    %422 = vperm.xlu0 %421, %v415
    %v423 = vpop.permute.xlu0 %422
    %426 = vset.pattern.permute.xlu0 0
    %427 = vperm.xlu0 %426, %v416
    %v428 = vpop.permute.xlu0 %427
    %431 = vset.pattern.permute.xlu0 0
    %432 = vperm.xlu0 %431, %v417
    %v433 = vpop.permute.xlu0 %432
    %436 = vset.pattern.permute.xlu0 0
    %437 = vperm.xlu0 %436, %v418
    %v438 = vpop.permute.xlu0 %437
    %441 = vset.pattern.permute.xlu0 0
    %442 = vperm.xlu0 %441, %v419
    %v443 = vpop.permute.xlu0 %442
    %v445 = vadd.f32 %v400, %v423
    %v446 = vadd.f32 %v401, %v423
    %v447 = vadd.f32 %v402, %v423
    %v448 = vadd.f32 %v403, %v428
    %v449 = vadd.f32 %v404, %v428
    %v450 = vadd.f32 %v405, %v428
    %v451 = vadd.f32 %v406, %v433
    %v452 = vadd.f32 %v407, %v433
    %v453 = vadd.f32 %v408, %v433
    %v454 = vadd.f32 %v409, %v438
    %v455 = vadd.f32 %v410, %v438
    %v456 = vadd.f32 %v411, %v438
    %v457 = vadd.f32 %v412, %v443
    %v458 = vadd.f32 %v413, %v443
    %v459 = vadd.f32 %v414, %v443
    %470 = vrot.lane.b32.xlu0 %v445, 38
    %v471 = vpop.permute.xlu0 %470
    %472 = vrot.lane.b32.xlu0 %v446, 38
    %v473 = vpop.permute.xlu0 %472
    %474 = vrot.lane.b32.xlu0 %v448, 38
    %v475 = vpop.permute.xlu0 %474
    %476 = vrot.lane.b32.xlu0 %v449, 38
    %v477 = vpop.permute.xlu0 %476
    %478 = vrot.lane.b32.xlu0 %v451, 38
    %v479 = vpop.permute.xlu0 %478
    %480 = vrot.lane.b32.xlu0 %v452, 38
    %v481 = vpop.permute.xlu0 %480
    %482 = vrot.lane.b32.xlu0 %v454, 38
    %v483 = vpop.permute.xlu0 %482
    %484 = vrot.lane.b32.xlu0 %v455, 38
    %v485 = vpop.permute.xlu0 %484
    %486 = vrot.lane.b32.xlu0 %v457, 38
    %v487 = vpop.permute.xlu0 %486
    %488 = vrot.lane.b32.xlu0 %v458, 38
    %v489 = vpop.permute.xlu0 %488
    %vm490 = vcmask 310272
    %v491 = vsel %vm490, %v471, %v473
    %v492 = vsel %vm490, %v475, %v477
    %v493 = vsel %vm490, %v479, %v481
    %v494 = vsel %vm490, %v483, %v485
    %v495 = vsel %vm490, %v487, %v489
    %v501 = vmax.f32 %v445, %v491
    %v502 = vmax.f32 %v448, %v492
    %v503 = vmax.f32 %v451, %v493
    %v504 = vmax.f32 %v454, %v494
    %v505 = vmax.f32 %v457, %v495
    %511 = vrot.lane.b32.xlu0 %v447, 38
    %v512 = vpop.permute.xlu0 %511
    %513 = vrot.lane.b32.xlu0 %v450, 38
    %v514 = vpop.permute.xlu0 %513
    %515 = vrot.lane.b32.xlu0 %v453, 38
    %v516 = vpop.permute.xlu0 %515
    %517 = vrot.lane.b32.xlu0 %v456, 38
    %v518 = vpop.permute.xlu0 %517
    %519 = vrot.lane.b32.xlu0 %v459, 38
    %v520 = vpop.permute.xlu0 %519
    %v526 = vmax.f32 %v446, %v512
    %v527 = vmax.f32 %v447, %v512
    %v528 = vmax.f32 %v449, %v514
    %v529 = vmax.f32 %v450, %v514
    %v530 = vmax.f32 %v452, %v516
    %v531 = vmax.f32 %v453, %v516
    %v532 = vmax.f32 %v455, %v518
    %v533 = vmax.f32 %v456, %v518
    %v534 = vmax.f32 %v458, %v520
    %v535 = vmax.f32 %v459, %v520
    %546 = vrot.lane.b32.xlu0 %v526, 76
    %v547 = vpop.permute.xlu0 %546
    %548 = vrot.lane.b32.xlu0 %v527, 76
    %v549 = vpop.permute.xlu0 %548
    %550 = vrot.lane.b32.xlu0 %v528, 76
    %v551 = vpop.permute.xlu0 %550
    %552 = vrot.lane.b32.xlu0 %v529, 76
    %v553 = vpop.permute.xlu0 %552
    %554 = vrot.lane.b32.xlu0 %v530, 76
    %v555 = vpop.permute.xlu0 %554
    %556 = vrot.lane.b32.xlu0 %v531, 76
    %v557 = vpop.permute.xlu0 %556
    %558 = vrot.lane.b32.xlu0 %v532, 76
    %v559 = vpop.permute.xlu0 %558
    %560 = vrot.lane.b32.xlu0 %v533, 76
    %v561 = vpop.permute.xlu0 %560
    %562 = vrot.lane.b32.xlu0 %v534, 76
    %v563 = vpop.permute.xlu0 %562
    %564 = vrot.lane.b32.xlu0 %v535, 76
    %v565 = vpop.permute.xlu0 %564
    %vm566 = vcmask 621568
    %v567 = vsel %vm566, %v547, %v549
    %v568 = vsel %vm566, %v551, %v553
    %v569 = vsel %vm566, %v555, %v557
    %v570 = vsel %vm566, %v559, %v561
    %v571 = vsel %vm566, %v563, %v565
    %v577 = vmax.f32 %v501, %v567
    %v578 = vmax.f32 %v502, %v568
    %v579 = vmax.f32 %v503, %v569
    %v580 = vmax.f32 %v504, %v570
    %v581 = vmax.f32 %v505, %v571
    %v582 = vld [vmem:[%s5] sm:$0xff]
    %v583 = vld [vmem:[%s5 + $0x8] sm:$0xff]
    %v584 = vld [vmem:[%s5 + $0x10] sm:$0xff]
    %v585 = vld [vmem:[%s5 + $0x18] sm:$0xff]
    %v586 = vld [vmem:[%s5 + $0x20] sm:$0xff]
    %v587 = vld [vmem:[%s5 + $0x28] sm:$0x1f]
    %v588 = vld [vmem:[%s7] sm:$0x1]
    %v590 = vlaneseq
    %v591 = vshrl.u32 %v590, 7
    %v592 = vsub.s32 0, %v591
    %v593 = vrot.slane %v588, %v592
    %vm595 = vcmask 367616
    %v597 = vsel %vm595, %v577, 0
    %v600 = vsel %vm595, %v578, 0
    %v603 = vsel %vm595, %v579, 0
    %v606 = vsel %vm595, %v580, 0
    %v609 = vsel %vm595, %v581, 0
    %vm611 = vcmask 1044480
    %v613 = vsel %vm611, %v587, 0
    %615 = vmatprep.subr.mxu0 0.0
    %616 = vmatpush1.msra.mxu0 %v582
    %617 = vmatprep.subr.mxu0 0.0
    %618 = vmatpush1.msra.mxu0 %v583
    %619 = vmatprep.subr.mxu0 0.0
    %620 = vmatpush1.msra.mxu0 %v584
    %621 = vmatprep.subr.mxu0 0.0
    %622 = vmatpush1.msra.mxu0 %v585
    %623 = vmatprep.subr.mxu0 0.0
    %624 = vmatpush1.msra.mxu0 %v586
    %625 = vmatprep.subr.mxu0 0.0
    %626 = vmatpush1.msra.mxu0 %v613
    %627 = vmatprep.subr.mxu0 0.0
    %628 = vmatpush1.msra.mxu0 0.0
    %629 = vmatprep.subr.mxu0 0.0
    %630 = vmatpush1.msra.mxu0 0.0
    %631 = vmatprep.subr.mxu0 0.0
    %632 = vmatpush1.msra.mxu0 0.0
    %633 = vmatprep.subr.mxu0 0.0
    %634 = vmatpush1.msra.mxu0 0.0
    %635 = vmatprep.subr.mxu0 0.0
    %636 = vmatpush1.msra.mxu0 0.0
    %637 = vmatprep.subr.mxu0 0.0
    %638 = vmatpush1.msra.mxu0 0.0
    %639 = vmatprep.subr.mxu0 0.0
    %640 = vmatpush1.msra.mxu0 0.0
    %641 = vmatprep.subr.mxu0 0.0
    %642 = vmatpush1.msra.mxu0 0.0
    %643 = vmatprep.subr.mxu0 0.0
    %644 = vmatpush1.msra.mxu0 0.0
    %645 = vmatprep.subr.mxu0 0.0
    %646 = vmatpush1.msra.mxu0 0.0
    %647 = vmatprep.subr.mxu0 0.0
    %648 = vmatpush1.msra.mxu0 0.0
    %649 = vmatprep.subr.mxu0 0.0
    %650 = vmatpush1.msra.mxu0 0.0
    %651 = vmatprep.subr.mxu0 0.0
    %652 = vmatpush1.msra.mxu0 0.0
    %653 = vmatprep.subr.mxu0 0.0
    %654 = vmatpush1.msra.mxu0 0.0
    %655 = vmatprep.subr.mxu0 0.0
    %656 = vmatpush1.msra.mxu0 0.0
    %657 = vmatprep.subr.mxu0 0.0
    %658 = vmatpush1.msra.mxu0 0.0
    %659 = vmatprep.subr.mxu0 0.0
    %660 = vmatpush1.msra.mxu0 0.0
    %661 = vmatprep.subr.mxu0 0.0
    %662 = vmatpush1.msra.mxu0 0.0
    %663 = vmatprep.subr.mxu0 0.0
    %664 = vmatpush1.msra.mxu0 0.0
    %665 = vmatprep.subr.mxu0 0.0
    %666 = vmatpush1.msra.mxu0 0.0
    %667 = vmatprep.subr.mxu0 0.0
    %668 = vmatpush1.msra.mxu0 0.0
    %669 = vmatprep.subr.mxu0 0.0
    %670 = vmatpush1.msra.mxu0 0.0
    %671 = vmatprep.subr.mxu0 0.0
    %672 = vmatpush1.msra.mxu0 0.0
    %673 = vmatprep.subr.mxu0 0.0
    %674 = vmatpush1.msra.mxu0 0.0
    %675 = vmatprep.subr.mxu0 0.0
    %676 = vmatpush1.msra.mxu0 0.0
    %677 = vmatprep.subr.mxu0 0.0
    %678 = vmatpush1.msra.mxu0 0.0
    %679 = vmatprep.mubr.f32.mxu0 0.0
    %680 = vmatmul.mubr.f32.gmra.mrb[0].mxu0 %v597
    %v681 = vpop.f32.mrb[0].mxu0
    %v682 = vadd.f32 %v593, %v681
    %v683 = vpop.f32.mrb[0].mxu0
    %684 = vmatprep.mubr.f32.mxu0 0.0
    %685 = vmatmul.mubr.f32.gmra.mrb[0].mxu0 %v600
    %v686 = vpop.f32.mrb[0].mxu0
    %v687 = vadd.f32 %v593, %v686
    %v688 = vpop.f32.mrb[0].mxu0
    %689 = vmatprep.mubr.f32.mxu0 0.0
    %690 = vmatmul.mubr.f32.gmra.mrb[0].mxu0 %v603
    %v691 = vpop.f32.mrb[0].mxu0
    %v692 = vadd.f32 %v593, %v691
    %v693 = vpop.f32.mrb[0].mxu0
    %694 = vmatprep.mubr.f32.mxu0 0.0
    %695 = vmatmul.mubr.f32.gmra.mrb[0].mxu0 %v606
    %v696 = vpop.f32.mrb[0].mxu0
    %v697 = vadd.f32 %v593, %v696
    %v698 = vpop.f32.mrb[0].mxu0
    %699 = vmatprep.mubr.f32.mxu0 0.0
    %700 = vmatmul.mubr.f32.gmra.mrb[0].mxu0 %v609
    %v701 = vpop.f32.mrb[0].mxu0
    %v702 = vadd.f32 %v593, %v701
    %v703 = vpop.f32.mrb[0].mxu0
    %704 = vdwg.mxu0
    %705 = vst [vmem:[#allocation2] sm:$0xff] %v682
    %706 = vst [vmem:[#allocation2 + $0x8] sm:$0xff] %v687
    %707 = vst [vmem:[#allocation2 + $0x10] sm:$0xff] %v692
    %708 = vst [vmem:[#allocation2 + $0x18] sm:$0xff] %v697
    %709 = vst [vmem:[#allocation2 + $0x20] sm:$0xff] %v702
    %710 = vrot.lane.b32.xlu0 %v577, 83
    %v711 = vpop.permute.xlu0 %710
    %712 = vrot.lane.b32.xlu0 %v578, 83
    %v713 = vpop.permute.xlu0 %712
    %714 = vrot.lane.b32.xlu0 %v579, 83
    %v715 = vpop.permute.xlu0 %714
    %716 = vrot.lane.b32.xlu0 %v580, 83
    %v717 = vpop.permute.xlu0 %716
    %718 = vrot.lane.b32.xlu0 %v581, 83
    %v719 = vpop.permute.xlu0 %718
    %v720 = vsel %vm595, %v711, 0
    %v722 = vsel %vm595, %v713, 0
    %v724 = vsel %vm595, %v715, 0
    %v726 = vsel %vm595, %v717, 0
    %v728 = vsel %vm595, %v719, 0
    %730 = vmatprep.subr.mxu0 0.0
    %731 = vmatpush1.msra.mxu0 %v582
    %732 = vmatprep.subr.mxu0 0.0
    %733 = vmatpush1.msra.mxu0 %v583
    %734 = vmatprep.subr.mxu0 0.0
    %735 = vmatpush1.msra.mxu0 %v584
    %736 = vmatprep.subr.mxu0 0.0
    %737 = vmatpush1.msra.mxu0 %v585
    %738 = vmatprep.subr.mxu0 0.0
    %739 = vmatpush1.msra.mxu0 %v586
    %740 = vmatprep.subr.mxu0 0.0
    %741 = vmatpush1.msra.mxu0 %v613
    %742 = vmatprep.subr.mxu0 0.0
    %743 = vmatpush1.msra.mxu0 0.0
    %744 = vmatprep.subr.mxu0 0.0
    %745 = vmatpush1.msra.mxu0 0.0
    %746 = vmatprep.subr.mxu0 0.0
    %747 = vmatpush1.msra.mxu0 0.0
    %748 = vmatprep.subr.mxu0 0.0
    %749 = vmatpush1.msra.mxu0 0.0
    %750 = vmatprep.subr.mxu0 0.0
    %751 = vmatpush1.msra.mxu0 0.0
    %752 = vmatprep.subr.mxu0 0.0
    %753 = vmatpush1.msra.mxu0 0.0
    %754 = vmatprep.subr.mxu0 0.0
    %755 = vmatpush1.msra.mxu0 0.0
    %756 = vmatprep.subr.mxu0 0.0
    %757 = vmatpush1.msra.mxu0 0.0
    %758 = vmatprep.subr.mxu0 0.0
    %759 = vmatpush1.msra.mxu0 0.0
    %760 = vmatprep.subr.mxu0 0.0
    %761 = vmatpush1.msra.mxu0 0.0
    %762 = vmatprep.subr.mxu0 0.0
    %763 = vmatpush1.msra.mxu0 0.0
    %764 = vmatprep.subr.mxu0 0.0
    %765 = vmatpush1.msra.mxu0 0.0
    %766 = vmatprep.subr.mxu0 0.0
    %767 = vmatpush1.msra.mxu0 0.0
    %768 = vmatprep.subr.mxu0 0.0
    %769 = vmatpush1.msra.mxu0 0.0
    %770 = vmatprep.subr.mxu0 0.0
    %771 = vmatpush1.msra.mxu0 0.0
    %772 = vmatprep.subr.mxu0 0.0
    %773 = vmatpush1.msra.mxu0 0.0
    %774 = vmatprep.subr.mxu0 0.0
    %775 = vmatpush1.msra.mxu0 0.0
    %776 = vmatprep.subr.mxu0 0.0
    %777 = vmatpush1.msra.mxu0 0.0
    %778 = vmatprep.subr.mxu0 0.0
    %779 = vmatpush1.msra.mxu0 0.0
    %780 = vmatprep.subr.mxu0 0.0
    %781 = vmatpush1.msra.mxu0 0.0
    %782 = vmatprep.subr.mxu0 0.0
    %783 = vmatpush1.msra.mxu0 0.0
    %784 = vmatprep.subr.mxu0 0.0
    %785 = vmatpush1.msra.mxu0 0.0
    %786 = vmatprep.subr.mxu0 0.0
    %787 = vmatpush1.msra.mxu0 0.0
    %788 = vmatprep.subr.mxu0 0.0
    %789 = vmatpush1.msra.mxu0 0.0
    %790 = vmatprep.subr.mxu0 0.0
    %791 = vmatpush1.msra.mxu0 0.0
    %792 = vmatprep.subr.mxu0 0.0
    %793 = vmatpush1.msra.mxu0 0.0
    %794 = vmatprep.mubr.f32.mxu0 0.0
    %795 = vmatmul.mubr.f32.gmra.mrb[0].mxu0 %v720
    %v796 = vpop.f32.mrb[0].mxu0
    %v797 = vadd.f32 %v593, %v796
    %v798 = vpop.f32.mrb[0].mxu0
    %799 = vmatprep.mubr.f32.mxu0 0.0
    %800 = vmatmul.mubr.f32.gmra.mrb[0].mxu0 %v722
    %v801 = vpop.f32.mrb[0].mxu0
    %v802 = vadd.f32 %v593, %v801
    %v803 = vpop.f32.mrb[0].mxu0
    %804 = vmatprep.mubr.f32.mxu0 0.0
    %805 = vmatmul.mubr.f32.gmra.mrb[0].mxu0 %v724
    %v806 = vpop.f32.mrb[0].mxu0
    %v807 = vadd.f32 %v593, %v806
    %v808 = vpop.f32.mrb[0].mxu0
    %809 = vmatprep.mubr.f32.mxu0 0.0
    %810 = vmatmul.mubr.f32.gmra.mrb[0].mxu0 %v726
    %v811 = vpop.f32.mrb[0].mxu0
    %v812 = vadd.f32 %v593, %v811
    %v813 = vpop.f32.mrb[0].mxu0
    %814 = vmatprep.mubr.f32.mxu0 0.0
    %815 = vmatmul.mubr.f32.gmra.mrb[0].mxu0 %v728
    %v816 = vpop.f32.mrb[0].mxu0
    %v817 = vadd.f32 %v593, %v816
    %v818 = vpop.f32.mrb[0].mxu0
    %819 = vdwg.mxu0
    %s820 = scalar_lea.vmem [#allocation2], 40
    %821 = vst [vmem:[%s820] sm:$0xff] %v797
    %822 = vst [vmem:[%s820 + $0x8] sm:$0xff] %v802
    %823 = vst [vmem:[%s820 + $0x10] sm:$0xff] %v807
    %824 = vst [vmem:[%s820 + $0x18] sm:$0xff] %v812
    %825 = vst [vmem:[%s820 + $0x20] sm:$0xff] %v817
    %v826 = vld [vmem:[%s6] sm:$0xff]
    %v827 = vld [vmem:[%s6 + $0x8] sm:$0xff]
    %v828 = vld [vmem:[%s6 + $0x10] sm:$0xff]
    %v829 = vld [vmem:[%s6 + $0x18] sm:$0xff]
    %v830 = vld [vmem:[%s10] sm:$0xff]
    %v831 = vld [vmem:[%s10 + $0x8] sm:$0xff]
    %v832 = vld [vmem:[%s10 + $0x10] sm:$0xff]
    %v833 = vld [vmem:[%s10 + $0x18] sm:$0xff]
    %v834 = vld [vmem:[%s10 + $0x20] sm:$0xff]
    %v835 = vld [vmem:[%s10 + $0x28] sm:$0xff]
    %v836 = vld [vmem:[%s10 + $0x30] sm:$0xff]
    %v837 = vld [vmem:[%s10 + $0x38] sm:$0xff]
    %v838 = vld [vmem:[%s11] sm:$0x1]
    %v839 = vld [vmem:[%s8] sm:$0xff]
    %v840 = vld [vmem:[%s8 + $0x8] sm:$0xff]
    %v841 = vld [vmem:[%s8 + $0x10] sm:$0xff]
    %v842 = vld [vmem:[%s8 + $0x18] sm:$0xff]
    %v843 = vld [vmem:[%s8 + $0x20] sm:$0xff]
    %v844 = vld [vmem:[%s9] sm:$0xff]
    %v845 = vld [vmem:[%s9 + $0x8] sm:$0xff]
    %v846 = vld [vmem:[%s9 + $0x10] sm:$0xff]
    %v847 = vld [vmem:[%s9 + $0x18] sm:$0xff]
    %v848 = vld [vmem:[%s9 + $0x20] sm:$0xff]
    %v849 = vld [vmem:[%s12] sm:$0xff]
    %v850 = vld [vmem:[%s12 + $0x8] sm:$0xff]
    %v851 = vld [vmem:[%s12 + $0x10] sm:$0xff]
    %v852 = vld [vmem:[%s12 + $0x18] sm:$0xff]
    %v853 = vld [vmem:[%s12 + $0x20] sm:$0xff]
    %v854 = vld [vmem:[%s13] sm:$0xff]
    %v855 = vld [vmem:[%s13 + $0x8] sm:$0xff]
    %v856 = vld [vmem:[%s13 + $0x10] sm:$0xff]
    %v857 = vld [vmem:[%s13 + $0x18] sm:$0xff]
    %v858 = vld [vmem:[%s13 + $0x20] sm:$0xff]
    %v859 = vld [vmem:[#allocation2] sm:$0xff]
    %v860 = vld [vmem:[#allocation2 + $0x8] sm:$0xff]
    %v861 = vld [vmem:[#allocation2 + $0x10] sm:$0xff]
    %v862 = vld [vmem:[#allocation2 + $0x18] sm:$0xff]
    %v863 = vld [vmem:[#allocation2 + $0x20] sm:$0xff]
    %v865 = vsel %vm154, 0.0, 0
    %867 = vmatprep.subr.mxu0 0.0
    %868 = vmatpush1.msra.mxu0 %v826
    %869 = vmatprep.subr.mxu0 0.0
    %870 = vmatpush1.msra.mxu0 %v827
    %871 = vmatprep.subr.mxu0 0.0
    %872 = vmatpush1.msra.mxu0 %v828
    %873 = vmatprep.subr.mxu0 0.0
    %874 = vmatpush1.msra.mxu0 %v829
    %875 = vmatprep.subr.mxu0 0.0
    %876 = vmatpush1.msra.mxu0 0.0
    %877 = vmatprep.subr.mxu0 0.0
    %878 = vmatpush1.msra.mxu0 0.0
    %879 = vmatprep.subr.mxu0 0.0
    %880 = vmatpush1.msra.mxu0 0.0
    %881 = vmatprep.subr.mxu0 0.0
    %882 = vmatpush1.msra.mxu0 0.0
    %883 = vmatprep.subr.mxu0 0.0
    %884 = vmatpush1.msra.mxu0 0.0
    %885 = vmatprep.subr.mxu0 0.0
    %886 = vmatpush1.msra.mxu0 0.0
    %887 = vmatprep.subr.mxu0 0.0
    %888 = vmatpush1.msra.mxu0 0.0
    %889 = vmatprep.subr.mxu0 0.0
    %890 = vmatpush1.msra.mxu0 0.0
    %891 = vmatprep.subr.mxu0 0.0
    %892 = vmatpush1.msra.mxu0 0.0
    %893 = vmatprep.subr.mxu0 0.0
    %894 = vmatpush1.msra.mxu0 0.0
    %895 = vmatprep.subr.mxu0 0.0
    %896 = vmatpush1.msra.mxu0 0.0
    %897 = vmatprep.subr.mxu0 0.0
    %898 = vmatpush1.msra.mxu0 0.0
    %899 = vmatprep.subr.mxu0 0.0
    %900 = vmatpush1.msra.mxu0 0.0
    %901 = vmatprep.subr.mxu0 0.0
    %902 = vmatpush1.msra.mxu0 0.0
    %903 = vmatprep.subr.mxu0 0.0
    %904 = vmatpush1.msra.mxu0 0.0
    %905 = vmatprep.subr.mxu0 0.0
    %906 = vmatpush1.msra.mxu0 0.0
    %907 = vmatprep.subr.mxu0 0.0
    %908 = vmatpush1.msra.mxu0 0.0
    %909 = vmatprep.subr.mxu0 0.0
    %910 = vmatpush1.msra.mxu0 0.0
    %911 = vmatprep.subr.mxu0 0.0
    %912 = vmatpush1.msra.mxu0 0.0
    %913 = vmatprep.subr.mxu0 0.0
    %914 = vmatpush1.msra.mxu0 0.0
    %915 = vmatprep.subr.mxu0 0.0
    %916 = vmatpush1.msra.mxu0 0.0
    %917 = vmatprep.subr.mxu0 0.0
    %918 = vmatpush1.msra.mxu0 0.0
    %919 = vmatprep.subr.mxu0 0.0
    %920 = vmatpush1.msra.mxu0 0.0
    %921 = vmatprep.subr.mxu0 0.0
    %922 = vmatpush1.msra.mxu0 0.0
    %923 = vmatprep.subr.mxu0 0.0
    %924 = vmatpush1.msra.mxu0 0.0
    %925 = vmatprep.subr.mxu0 0.0
    %926 = vmatpush1.msra.mxu0 0.0
    %927 = vmatprep.subr.mxu0 0.0
    %928 = vmatpush1.msra.mxu0 0.0
    %929 = vmatprep.subr.mxu0 0.0
    %930 = vmatpush1.msra.mxu0 0.0
    %931 = vmatprep.mubr.f32.mxu0 0.0
    %932 = vmatmul.mubr.f32.gmra.mrb[0].mxu0 %v865
    %v933 = vpop.f32.mrb[0].mxu0
    %v934 = vadd.f32 0.0, %v933
    %v935 = vpop.f32.mrb[0].mxu0
    %936 = vmatprep.mubr.f32.mxu0 0.0
    %937 = vmatmul.mubr.f32.gmra.mrb[0].mxu0 %v865
    %v938 = vpop.f32.mrb[0].mxu0
    %v939 = vadd.f32 0.0, %v938
    %v940 = vpop.f32.mrb[0].mxu0
    %941 = vmatprep.mubr.f32.mxu0 0.0
    %942 = vmatmul.mubr.f32.gmra.mrb[0].mxu0 %v865
    %v943 = vpop.f32.mrb[0].mxu0
    %v944 = vadd.f32 0.0, %v943
    %v945 = vpop.f32.mrb[0].mxu0
    %946 = vmatprep.mubr.f32.mxu0 0.0
    %947 = vmatmul.mubr.f32.gmra.mrb[0].mxu0 %v865
    %v948 = vpop.f32.mrb[0].mxu0
    %v949 = vadd.f32 0.0, %v948
    %v950 = vpop.f32.mrb[0].mxu0
    %951 = vmatprep.mubr.f32.mxu0 0.0
    %952 = vmatmul.mubr.f32.gmra.mrb[0].mxu0 %v865
    %v953 = vpop.f32.mrb[0].mxu0
    %v954 = vadd.f32 0.0, %v953
    %v955 = vpop.f32.mrb[0].mxu0
    %956 = vdwg.mxu0
    %v957 = vadd.f32 %v859, %v934
    %v958 = vadd.f32 %v860, %v939
    %v959 = vadd.f32 %v861, %v944
    %v960 = vadd.f32 %v862, %v949
    %v961 = vadd.f32 %v863, %v954
    %v962 = vxor.u32 %v957, 2147483648
    %v963 = vxor.u32 %v958, 2147483648
    %v964 = vxor.u32 %v959, 2147483648
    %v965 = vxor.u32 %v960, 2147483648
    %v966 = vxor.u32 %v961, 2147483648
    %v967 = vmul.f32 %v962, 1.442695
    %v968 = vpow.pop %v967
    %v969 = vmul.f32 %v963, 1.442695
    %v970 = vpow.pop %v969
    %v971 = vmul.f32 %v964, 1.442695
    %v972 = vpow.pop %v971
    %v973 = vmul.f32 %v965, 1.442695
    %v974 = vpow.pop %v973
    %v975 = vmul.f32 %v966, 1.442695
    %v976 = vpow.pop %v975
    %v977 = vadd.f32 %v968, 1.0
    %v978 = vadd.f32 %v970, 1.0
    %v979 = vadd.f32 %v972, 1.0
    %v980 = vadd.f32 %v974, 1.0
    %v981 = vadd.f32 %v976, 1.0
    %v982 = vrcp.pop %v977
    %v983 = vmul.f32 1.0, %v982
    %v984 = vrcp.pop %v978
    %v985 = vmul.f32 1.0, %v984
    %v986 = vrcp.pop %v979
    %v987 = vmul.f32 1.0, %v986
    %v988 = vrcp.pop %v980
    %v989 = vmul.f32 1.0, %v988
    %v990 = vrcp.pop %v981
    %v991 = vmul.f32 1.0, %v990
    %v992 = vtanh.pop %v957
    %v993 = vtanh.pop %v958
    %v994 = vtanh.pop %v959
    %v995 = vtanh.pop %v960
    %v996 = vtanh.pop %v961
    %v997 = vmul.f32 %v983, 0.0
    %v998 = vmul.f32 %v985, 0.0
    %v999 = vmul.f32 %v987, 0.0
    %v1000 = vmul.f32 %v989, 0.0
    %v1001 = vmul.f32 %v991, 0.0
    %1007 = vrot.lane.b32.xlu0 %v992, 64
    %v1008 = vpop.permute.xlu0 %1007
    %1009 = vrot.lane.b32.xlu0 %v993, 64
    %v1010 = vpop.permute.xlu0 %1009
    %1011 = vrot.lane.b32.xlu0 %v994, 64
    %v1012 = vpop.permute.xlu0 %1011
    %1013 = vrot.lane.b32.xlu0 %v995, 64
    %v1014 = vpop.permute.xlu0 %1013
    %1015 = vrot.lane.b32.xlu0 %v996, 64
    %v1016 = vpop.permute.xlu0 %1015
    %v1022 = vmul.f32 %v983, %v1008
    %v1023 = vmul.f32 %v985, %v1010
    %v1024 = vmul.f32 %v987, %v1012
    %v1025 = vmul.f32 %v989, %v1014
    %v1026 = vmul.f32 %v991, %v1016
    %1032 = vrot.lane.b32.xlu0 %v1022, 32
    %v1033 = vpop.permute.xlu0 %1032
    %1034 = vrot.lane.b32.xlu0 %v1023, 32
    %v1035 = vpop.permute.xlu0 %1034
    %1036 = vrot.lane.b32.xlu0 %v1024, 32
    %v1037 = vpop.permute.xlu0 %1036
    %1038 = vrot.lane.b32.xlu0 %v1025, 32
    %v1039 = vpop.permute.xlu0 %1038
    %1040 = vrot.lane.b32.xlu0 %v1026, 32
    %v1041 = vpop.permute.xlu0 %1040
    %v1047 = vadd.f32 %v997, %v1033
    %v1048 = vadd.f32 %v998, %v1035
    %v1049 = vadd.f32 %v999, %v1037
    %v1050 = vadd.f32 %v1000, %v1039
    %v1051 = vadd.f32 %v1001, %v1041
    %v1052 = vtanh.pop %v1047
    %v1053 = vtanh.pop %v1048
    %v1054 = vtanh.pop %v1049
    %v1055 = vtanh.pop %v1050
    %v1056 = vtanh.pop %v1051
    %1062 = vrot.lane.b32.xlu0 %v1052, 64
    %v1063 = vpop.permute.xlu0 %1062
    %1064 = vrot.lane.b32.xlu0 %v1053, 64
    %v1065 = vpop.permute.xlu0 %1064
    %1066 = vrot.lane.b32.xlu0 %v1054, 64
    %v1067 = vpop.permute.xlu0 %1066
    %1068 = vrot.lane.b32.xlu0 %v1055, 64
    %v1069 = vpop.permute.xlu0 %1068
    %1070 = vrot.lane.b32.xlu0 %v1056, 64
    %v1071 = vpop.permute.xlu0 %1070
    %v1077 = vmul.f32 %v983, %v1063
    %v1078 = vmul.f32 %v985, %v1065
    %v1079 = vmul.f32 %v987, %v1067
    %v1080 = vmul.f32 %v989, %v1069
    %v1081 = vmul.f32 %v991, %v1071
    %1083 = vset.pattern.permute.xlu0 0
    %1084 = vperm.xlu0 %1083, %v839
    %v1085 = vpop.permute.xlu0 %1084
    %1088 = vset.pattern.permute.xlu0 0
    %1089 = vperm.xlu0 %1088, %v840
    %v1090 = vpop.permute.xlu0 %1089
    %1093 = vset.pattern.permute.xlu0 0
    %1094 = vperm.xlu0 %1093, %v841
    %v1095 = vpop.permute.xlu0 %1094
    %1098 = vset.pattern.permute.xlu0 0
    %1099 = vperm.xlu0 %1098, %v842
    %v1100 = vpop.permute.xlu0 %1099
    %1103 = vset.pattern.permute.xlu0 0
    %1104 = vperm.xlu0 %1103, %v843
    %v1105 = vpop.permute.xlu0 %1104
    %v1107 = vmul.f32 %v1077, %v1085
    %v1108 = vmul.f32 %v1078, %v1090
    %v1109 = vmul.f32 %v1079, %v1095
    %v1110 = vmul.f32 %v1080, %v1100
    %v1111 = vmul.f32 %v1081, %v1105
    %1113 = vset.pattern.permute.xlu0 0
    %1114 = vperm.xlu0 %1113, %v844
    %v1115 = vpop.permute.xlu0 %1114
    %1118 = vset.pattern.permute.xlu0 0
    %1119 = vperm.xlu0 %1118, %v845
    %v1120 = vpop.permute.xlu0 %1119
    %1123 = vset.pattern.permute.xlu0 0
    %1124 = vperm.xlu0 %1123, %v846
    %v1125 = vpop.permute.xlu0 %1124
    %1128 = vset.pattern.permute.xlu0 0
    %1129 = vperm.xlu0 %1128, %v847
    %v1130 = vpop.permute.xlu0 %1129
    %1133 = vset.pattern.permute.xlu0 0
    %1134 = vperm.xlu0 %1133, %v848
    %v1135 = vpop.permute.xlu0 %1134
    %v1137 = vadd.f32 %v1107, %v1115
    %v1138 = vadd.f32 %v1108, %v1120
    %v1139 = vadd.f32 %v1109, %v1125
    %v1140 = vadd.f32 %v1110, %v1130
    %v1141 = vadd.f32 %v1111, %v1135
    %1147 = vrot.lane.b32.xlu0 %v1137, 32
    %v1148 = vpop.permute.xlu0 %1147
    %1149 = vrot.lane.b32.xlu0 %v1138, 32
    %v1150 = vpop.permute.xlu0 %1149
    %1151 = vrot.lane.b32.xlu0 %v1139, 32
    %v1152 = vpop.permute.xlu0 %1151
    %1153 = vrot.lane.b32.xlu0 %v1140, 32
    %v1154 = vpop.permute.xlu0 %1153
    %1155 = vrot.lane.b32.xlu0 %v1141, 32
    %v1156 = vpop.permute.xlu0 %1155
    %v1162 = vsel %vm154, %v1148, 0.0
    %v1163 = vsel %vm154, %v1150, 0.0
    %v1164 = vsel %vm154, %v1152, 0.0
    %v1165 = vsel %vm154, %v1154, 0.0
    %v1166 = vsel %vm154, %v1156, 0.0
    %v1168 = vlaneseq
    %v1169 = vshrl.u32 %v1168, 7
    %v1170 = vsub.s32 0, %v1169
    %v1171 = vrot.slane %v838, %v1170
    %vm1173 = vcmask 523264
    %v1175 = vsel %vm1173, %v1162, 0
    %v1178 = vsel %vm1173, %v1163, 0
    %v1181 = vsel %vm1173, %v1164, 0
    %v1184 = vsel %vm1173, %v1165, 0
    %v1187 = vsel %vm1173, %v1166, 0
    %1189 = vmatprep.subr.mxu0 0.0
    %1190 = vmatpush1.msra.mxu0 %v830
    %1191 = vmatprep.subr.mxu0 0.0
    %1192 = vmatpush1.msra.mxu0 %v831
    %1193 = vmatprep.subr.mxu0 0.0
    %1194 = vmatpush1.msra.mxu0 %v832
    %1195 = vmatprep.subr.mxu0 0.0
    %1196 = vmatpush1.msra.mxu0 %v833
    %1197 = vmatprep.subr.mxu0 0.0
    %1198 = vmatpush1.msra.mxu0 %v834
    %1199 = vmatprep.subr.mxu0 0.0
    %1200 = vmatpush1.msra.mxu0 %v835
    %1201 = vmatprep.subr.mxu0 0.0
    %1202 = vmatpush1.msra.mxu0 %v836
    %1203 = vmatprep.subr.mxu0 0.0
    %1204 = vmatpush1.msra.mxu0 %v837
    %1205 = vmatprep.subr.mxu0 0.0
    %1206 = vmatpush1.msra.mxu0 0.0
    %1207 = vmatprep.subr.mxu0 0.0
    %1208 = vmatpush1.msra.mxu0 0.0
    %1209 = vmatprep.subr.mxu0 0.0
    %1210 = vmatpush1.msra.mxu0 0.0
    %1211 = vmatprep.subr.mxu0 0.0
    %1212 = vmatpush1.msra.mxu0 0.0
    %1213 = vmatprep.subr.mxu0 0.0
    %1214 = vmatpush1.msra.mxu0 0.0
    %1215 = vmatprep.subr.mxu0 0.0
    %1216 = vmatpush1.msra.mxu0 0.0
    %1217 = vmatprep.subr.mxu0 0.0
    %1218 = vmatpush1.msra.mxu0 0.0
    %1219 = vmatprep.subr.mxu0 0.0
    %1220 = vmatpush1.msra.mxu0 0.0
    %1221 = vmatprep.subr.mxu0 0.0
    %1222 = vmatpush1.msra.mxu0 0.0
    %1223 = vmatprep.subr.mxu0 0.0
    %1224 = vmatpush1.msra.mxu0 0.0
    %1225 = vmatprep.subr.mxu0 0.0
    %1226 = vmatpush1.msra.mxu0 0.0
    %1227 = vmatprep.subr.mxu0 0.0
    %1228 = vmatpush1.msra.mxu0 0.0
    %1229 = vmatprep.subr.mxu0 0.0
    %1230 = vmatpush1.msra.mxu0 0.0
    %1231 = vmatprep.subr.mxu0 0.0
    %1232 = vmatpush1.msra.mxu0 0.0
    %1233 = vmatprep.subr.mxu0 0.0
    %1234 = vmatpush1.msra.mxu0 0.0
    %1235 = vmatprep.subr.mxu0 0.0
    %1236 = vmatpush1.msra.mxu0 0.0
    %1237 = vmatprep.subr.mxu0 0.0
    %1238 = vmatpush1.msra.mxu0 0.0
    %1239 = vmatprep.subr.mxu0 0.0
    %1240 = vmatpush1.msra.mxu0 0.0
    %1241 = vmatprep.subr.mxu0 0.0
    %1242 = vmatpush1.msra.mxu0 0.0
    %1243 = vmatprep.subr.mxu0 0.0
    %1244 = vmatpush1.msra.mxu0 0.0
    %1245 = vmatprep.subr.mxu0 0.0
    %1246 = vmatpush1.msra.mxu0 0.0
    %1247 = vmatprep.subr.mxu0 0.0
    %1248 = vmatpush1.msra.mxu0 0.0
    %1249 = vmatprep.subr.mxu0 0.0
    %1250 = vmatpush1.msra.mxu0 0.0
    %1251 = vmatprep.subr.mxu0 0.0
    %1252 = vmatpush1.msra.mxu0 0.0
    %1253 = vmatprep.mubr.f32.mxu0 0.0
    %1254 = vmatmul.mubr.f32.gmra.mrb[0].mxu0 %v1175
    %v1255 = vpop.f32.mrb[0].mxu0
    %v1256 = vadd.f32 %v1171, %v1255
    %v1257 = vpop.f32.mrb[0].mxu0
    %1258 = vmatprep.mubr.f32.mxu0 0.0
    %1259 = vmatmul.mubr.f32.gmra.mrb[0].mxu0 %v1178
    %v1260 = vpop.f32.mrb[0].mxu0
    %v1261 = vadd.f32 %v1171, %v1260
    %v1262 = vpop.f32.mrb[0].mxu0
    %1263 = vmatprep.mubr.f32.mxu0 0.0
    %1264 = vmatmul.mubr.f32.gmra.mrb[0].mxu0 %v1181
    %v1265 = vpop.f32.mrb[0].mxu0
    %v1266 = vadd.f32 %v1171, %v1265
    %v1267 = vpop.f32.mrb[0].mxu0
    %1268 = vmatprep.mubr.f32.mxu0 0.0
    %1269 = vmatmul.mubr.f32.gmra.mrb[0].mxu0 %v1184
    %v1270 = vpop.f32.mrb[0].mxu0
    %v1271 = vadd.f32 %v1171, %v1270
    %v1272 = vpop.f32.mrb[0].mxu0
    %1273 = vmatprep.mubr.f32.mxu0 0.0
    %1274 = vmatmul.mubr.f32.gmra.mrb[0].mxu0 %v1187
    %v1275 = vpop.f32.mrb[0].mxu0
    %v1276 = vadd.f32 %v1171, %v1275
    %v1277 = vpop.f32.mrb[0].mxu0
    %1278 = vdwg.mxu0
    %v1279 = vxor.u32 %v1256, 2147483648
    %v1280 = vxor.u32 %v1261, 2147483648
    %v1281 = vxor.u32 %v1266, 2147483648
    %v1282 = vxor.u32 %v1271, 2147483648
    %v1283 = vxor.u32 %v1276, 2147483648
    %v1284 = vmul.f32 %v1279, 1.442695
    %v1285 = vpow.pop %v1284
    %v1286 = vmul.f32 %v1280, 1.442695
    %v1287 = vpow.pop %v1286
    %v1288 = vmul.f32 %v1281, 1.442695
    %v1289 = vpow.pop %v1288
    %v1290 = vmul.f32 %v1282, 1.442695
    %v1291 = vpow.pop %v1290
    %v1292 = vmul.f32 %v1283, 1.442695
    %v1293 = vpow.pop %v1292
    %v1294 = vadd.f32 %v1285, 1.0
    %v1295 = vadd.f32 %v1287, 1.0
    %v1296 = vadd.f32 %v1289, 1.0
    %v1297 = vadd.f32 %v1291, 1.0
    %v1298 = vadd.f32 %v1293, 1.0
    %v1299 = vrcp.pop %v1294
    %v1300 = vmul.f32 1.0, %v1299
    %v1301 = vrcp.pop %v1295
    %v1302 = vmul.f32 1.0, %v1301
    %v1303 = vrcp.pop %v1296
    %v1304 = vmul.f32 1.0, %v1303
    %v1305 = vrcp.pop %v1297
    %v1306 = vmul.f32 1.0, %v1305
    %v1307 = vrcp.pop %v1298
    %v1308 = vmul.f32 1.0, %v1307
    %v1309 = vtanh.pop %v1256
    %v1310 = vtanh.pop %v1261
    %v1311 = vtanh.pop %v1266
    %v1312 = vtanh.pop %v1271
    %v1313 = vtanh.pop %v1276
    %v1314 = vmul.f32 %v1300, 0.0
    %v1315 = vmul.f32 %v1302, 0.0
    %v1316 = vmul.f32 %v1304, 0.0
    %v1317 = vmul.f32 %v1306, 0.0
    %v1318 = vmul.f32 %v1308, 0.0
    %1324 = vrot.lane.b32.xlu0 %v1309, 64
    %v1325 = vpop.permute.xlu0 %1324
    %1326 = vrot.lane.b32.xlu0 %v1310, 64
    %v1327 = vpop.permute.xlu0 %1326
    %1328 = vrot.lane.b32.xlu0 %v1311, 64
    %v1329 = vpop.permute.xlu0 %1328
    %1330 = vrot.lane.b32.xlu0 %v1312, 64
    %v1331 = vpop.permute.xlu0 %1330
    %1332 = vrot.lane.b32.xlu0 %v1313, 64
    %v1333 = vpop.permute.xlu0 %1332
    %v1339 = vmul.f32 %v1300, %v1325
    %v1340 = vmul.f32 %v1302, %v1327
    %v1341 = vmul.f32 %v1304, %v1329
    %v1342 = vmul.f32 %v1306, %v1331
    %v1343 = vmul.f32 %v1308, %v1333
    %1349 = vrot.lane.b32.xlu0 %v1339, 32
    %v1350 = vpop.permute.xlu0 %1349
    %1351 = vrot.lane.b32.xlu0 %v1340, 32
    %v1352 = vpop.permute.xlu0 %1351
    %1353 = vrot.lane.b32.xlu0 %v1341, 32
    %v1354 = vpop.permute.xlu0 %1353
    %1355 = vrot.lane.b32.xlu0 %v1342, 32
    %v1356 = vpop.permute.xlu0 %1355
    %1357 = vrot.lane.b32.xlu0 %v1343, 32
    %v1358 = vpop.permute.xlu0 %1357
    %v1364 = vadd.f32 %v1314, %v1350
    %v1365 = vadd.f32 %v1315, %v1352
    %v1366 = vadd.f32 %v1316, %v1354
    %v1367 = vadd.f32 %v1317, %v1356
    %v1368 = vadd.f32 %v1318, %v1358
    %v1369 = vtanh.pop %v1364
    %v1370 = vtanh.pop %v1365
    %v1371 = vtanh.pop %v1366
    %v1372 = vtanh.pop %v1367
    %v1373 = vtanh.pop %v1368
    %1379 = vrot.lane.b32.xlu0 %v1369, 64
    %v1380 = vpop.permute.xlu0 %1379
    %1381 = vrot.lane.b32.xlu0 %v1370, 64
    %v1382 = vpop.permute.xlu0 %1381
    %1383 = vrot.lane.b32.xlu0 %v1371, 64
    %v1384 = vpop.permute.xlu0 %1383
    %1385 = vrot.lane.b32.xlu0 %v1372, 64
    %v1386 = vpop.permute.xlu0 %1385
    %1387 = vrot.lane.b32.xlu0 %v1373, 64
    %v1388 = vpop.permute.xlu0 %1387
    %v1394 = vmul.f32 %v1300, %v1380
    %v1395 = vmul.f32 %v1302, %v1382
    %v1396 = vmul.f32 %v1304, %v1384
    %v1397 = vmul.f32 %v1306, %v1386
    %v1398 = vmul.f32 %v1308, %v1388
    %1400 = vset.pattern.permute.xlu0 0
    %1401 = vperm.xlu0 %1400, %v849
    %v1402 = vpop.permute.xlu0 %1401
    %1405 = vset.pattern.permute.xlu0 0
    %1406 = vperm.xlu0 %1405, %v850
    %v1407 = vpop.permute.xlu0 %1406
    %1410 = vset.pattern.permute.xlu0 0
    %1411 = vperm.xlu0 %1410, %v851
    %v1412 = vpop.permute.xlu0 %1411
    %1415 = vset.pattern.permute.xlu0 0
    %1416 = vperm.xlu0 %1415, %v852
    %v1417 = vpop.permute.xlu0 %1416
    %1420 = vset.pattern.permute.xlu0 0
    %1421 = vperm.xlu0 %1420, %v853
    %v1422 = vpop.permute.xlu0 %1421
    %v1424 = vmul.f32 %v1394, %v1402
    %v1425 = vmul.f32 %v1395, %v1407
    %v1426 = vmul.f32 %v1396, %v1412
    %v1427 = vmul.f32 %v1397, %v1417
    %v1428 = vmul.f32 %v1398, %v1422
    %1430 = vset.pattern.permute.xlu0 0
    %1431 = vperm.xlu0 %1430, %v854
    %v1432 = vpop.permute.xlu0 %1431
    %1435 = vset.pattern.permute.xlu0 0
    %1436 = vperm.xlu0 %1435, %v855
    %v1437 = vpop.permute.xlu0 %1436
    %1440 = vset.pattern.permute.xlu0 0
    %1441 = vperm.xlu0 %1440, %v856
    %v1442 = vpop.permute.xlu0 %1441
    %1445 = vset.pattern.permute.xlu0 0
    %1446 = vperm.xlu0 %1445, %v857
    %v1447 = vpop.permute.xlu0 %1446
    %1450 = vset.pattern.permute.xlu0 0
    %1451 = vperm.xlu0 %1450, %v858
    %v1452 = vpop.permute.xlu0 %1451
    %v1454 = vadd.f32 %v1424, %v1432
    %v1455 = vadd.f32 %v1425, %v1437
    %v1456 = vadd.f32 %v1426, %v1442
    %v1457 = vadd.f32 %v1427, %v1447
    %v1458 = vadd.f32 %v1428, %v1452
    %1464 = vrot.lane.b32.xlu0 %v1454, 32
    %v1465 = vpop.permute.xlu0 %1464
    %1466 = vrot.lane.b32.xlu0 %v1455, 32
    %v1467 = vpop.permute.xlu0 %1466
    %1468 = vrot.lane.b32.xlu0 %v1456, 32
    %v1469 = vpop.permute.xlu0 %1468
    %1470 = vrot.lane.b32.xlu0 %v1457, 32
    %v1471 = vpop.permute.xlu0 %1470
    %1472 = vrot.lane.b32.xlu0 %v1458, 32
    %v1473 = vpop.permute.xlu0 %1472
    %1479 = vst.msk [vmem:[#allocation3] sm:$0xff] %vm154, %v1465
    %1480 = vst.msk [vmem:[#allocation3 + $0x8] sm:$0xff] %vm154, %v1467
    %1481 = vst.msk [vmem:[#allocation3 + $0x10] sm:$0xff] %vm154, %v1469
    %1482 = vst.msk [vmem:[#allocation3 + $0x18] sm:$0xff] %vm154, %v1471
    %1483 = vst.msk [vmem:[#allocation3 + $0x20] sm:$0xff] %vm154, %v1473
    %v1484 = vld [vmem:[%s820] sm:$0xff]
    %v1485 = vld [vmem:[%s820 + $0x8] sm:$0xff]
    %v1486 = vld [vmem:[%s820 + $0x10] sm:$0xff]
    %v1487 = vld [vmem:[%s820 + $0x18] sm:$0xff]
    %v1488 = vld [vmem:[%s820 + $0x20] sm:$0xff]
    %1494 = vrot.lane.b32.xlu0 %v1077, 32
    %v1495 = vpop.permute.xlu0 %1494
    %1496 = vrot.lane.b32.xlu0 %v1078, 32
    %v1497 = vpop.permute.xlu0 %1496
    %1498 = vrot.lane.b32.xlu0 %v1079, 32
    %v1499 = vpop.permute.xlu0 %1498
    %1500 = vrot.lane.b32.xlu0 %v1080, 32
    %v1501 = vpop.permute.xlu0 %1500
    %1502 = vrot.lane.b32.xlu0 %v1081, 32
    %v1503 = vpop.permute.xlu0 %1502
    %v1504 = vsel %vm154, %v1495, 0
    %v1506 = vsel %vm154, %v1497, 0
    %v1508 = vsel %vm154, %v1499, 0
    %v1510 = vsel %vm154, %v1501, 0
    %v1512 = vsel %vm154, %v1503, 0
    %1514 = vmatprep.subr.mxu0 0.0
    %1515 = vmatpush1.msra.mxu0 %v826
    %1516 = vmatprep.subr.mxu0 0.0
    %1517 = vmatpush1.msra.mxu0 %v827
    %1518 = vmatprep.subr.mxu0 0.0
    %1519 = vmatpush1.msra.mxu0 %v828
    %1520 = vmatprep.subr.mxu0 0.0
    %1521 = vmatpush1.msra.mxu0 %v829
    %1522 = vmatprep.subr.mxu0 0.0
    %1523 = vmatpush1.msra.mxu0 0.0
    %1524 = vmatprep.subr.mxu0 0.0
    %1525 = vmatpush1.msra.mxu0 0.0
    %1526 = vmatprep.subr.mxu0 0.0
    %1527 = vmatpush1.msra.mxu0 0.0
    %1528 = vmatprep.subr.mxu0 0.0
    %1529 = vmatpush1.msra.mxu0 0.0
    %1530 = vmatprep.subr.mxu0 0.0
    %1531 = vmatpush1.msra.mxu0 0.0
    %1532 = vmatprep.subr.mxu0 0.0
    %1533 = vmatpush1.msra.mxu0 0.0
    %1534 = vmatprep.subr.mxu0 0.0
    %1535 = vmatpush1.msra.mxu0 0.0
    %1536 = vmatprep.subr.mxu0 0.0
    %1537 = vmatpush1.msra.mxu0 0.0
    %1538 = vmatprep.subr.mxu0 0.0
    %1539 = vmatpush1.msra.mxu0 0.0
    %1540 = vmatprep.subr.mxu0 0.0
    %1541 = vmatpush1.msra.mxu0 0.0
    %1542 = vmatprep.subr.mxu0 0.0
    %1543 = vmatpush1.msra.mxu0 0.0
    %1544 = vmatprep.subr.mxu0 0.0
    %1545 = vmatpush1.msra.mxu0 0.0
    %1546 = vmatprep.subr.mxu0 0.0
    %1547 = vmatpush1.msra.mxu0 0.0
    %1548 = vmatprep.subr.mxu0 0.0
    %1549 = vmatpush1.msra.mxu0 0.0
    %1550 = vmatprep.subr.mxu0 0.0
    %1551 = vmatpush1.msra.mxu0 0.0
    %1552 = vmatprep.subr.mxu0 0.0
    %1553 = vmatpush1.msra.mxu0 0.0
    %1554 = vmatprep.subr.mxu0 0.0
    %1555 = vmatpush1.msra.mxu0 0.0
    %1556 = vmatprep.subr.mxu0 0.0
    %1557 = vmatpush1.msra.mxu0 0.0
    %1558 = vmatprep.subr.mxu0 0.0
    %1559 = vmatpush1.msra.mxu0 0.0
    %1560 = vmatprep.subr.mxu0 0.0
    %1561 = vmatpush1.msra.mxu0 0.0
    %1562 = vmatprep.subr.mxu0 0.0
    %1563 = vmatpush1.msra.mxu0 0.0
    %1564 = vmatprep.subr.mxu0 0.0
    %1565 = vmatpush1.msra.mxu0 0.0
    %1566 = vmatprep.subr.mxu0 0.0
    %1567 = vmatpush1.msra.mxu0 0.0
    %1568 = vmatprep.subr.mxu0 0.0
    %1569 = vmatpush1.msra.mxu0 0.0
    %1570 = vmatprep.subr.mxu0 0.0
    %1571 = vmatpush1.msra.mxu0 0.0
    %1572 = vmatprep.subr.mxu0 0.0
    %1573 = vmatpush1.msra.mxu0 0.0
    %1574 = vmatprep.subr.mxu0 0.0
    %1575 = vmatpush1.msra.mxu0 0.0
    %1576 = vmatprep.subr.mxu0 0.0
    %1577 = vmatpush1.msra.mxu0 0.0
    %1578 = vmatprep.mubr.f32.mxu0 0.0
    %1579 = vmatmul.mubr.f32.gmra.mrb[0].mxu0 %v1504
    %v1580 = vpop.f32.mrb[0].mxu0
    %v1581 = vadd.f32 0.0, %v1580
    %v1582 = vpop.f32.mrb[0].mxu0
    %1583 = vmatprep.mubr.f32.mxu0 0.0
    %1584 = vmatmul.mubr.f32.gmra.mrb[0].mxu0 %v1506
    %v1585 = vpop.f32.mrb[0].mxu0
    %v1586 = vadd.f32 0.0, %v1585
    %v1587 = vpop.f32.mrb[0].mxu0
    %1588 = vmatprep.mubr.f32.mxu0 0.0
    %1589 = vmatmul.mubr.f32.gmra.mrb[0].mxu0 %v1508
    %v1590 = vpop.f32.mrb[0].mxu0
    %v1591 = vadd.f32 0.0, %v1590
    %v1592 = vpop.f32.mrb[0].mxu0
    %1593 = vmatprep.mubr.f32.mxu0 0.0
    %1594 = vmatmul.mubr.f32.gmra.mrb[0].mxu0 %v1510
    %v1595 = vpop.f32.mrb[0].mxu0
    %v1596 = vadd.f32 0.0, %v1595
    %v1597 = vpop.f32.mrb[0].mxu0
    %1598 = vmatprep.mubr.f32.mxu0 0.0
    %1599 = vmatmul.mubr.f32.gmra.mrb[0].mxu0 %v1512
    %v1600 = vpop.f32.mrb[0].mxu0
    %v1601 = vadd.f32 0.0, %v1600
    %v1602 = vpop.f32.mrb[0].mxu0
    %1603 = vdwg.mxu0
    %v1604 = vadd.f32 %v1484, %v1581
    %v1605 = vadd.f32 %v1485, %v1586
    %v1606 = vadd.f32 %v1486, %v1591
    %v1607 = vadd.f32 %v1487, %v1596
    %v1608 = vadd.f32 %v1488, %v1601
    %v1609 = vxor.u32 %v1604, 2147483648
    %v1610 = vxor.u32 %v1605, 2147483648
    %v1611 = vxor.u32 %v1606, 2147483648
    %v1612 = vxor.u32 %v1607, 2147483648
    %v1613 = vxor.u32 %v1608, 2147483648
    %v1614 = vmul.f32 %v1609, 1.442695
    %v1615 = vpow.pop %v1614
    %v1616 = vmul.f32 %v1610, 1.442695
    %v1617 = vpow.pop %v1616
    %v1618 = vmul.f32 %v1611, 1.442695
    %v1619 = vpow.pop %v1618
    %v1620 = vmul.f32 %v1612, 1.442695
    %v1621 = vpow.pop %v1620
    %v1622 = vmul.f32 %v1613, 1.442695
    %v1623 = vpow.pop %v1622
    %v1624 = vadd.f32 %v1615, 1.0
    %v1625 = vadd.f32 %v1617, 1.0
    %v1626 = vadd.f32 %v1619, 1.0
    %v1627 = vadd.f32 %v1621, 1.0
    %v1628 = vadd.f32 %v1623, 1.0
    %v1629 = vrcp.pop %v1624
    %v1630 = vmul.f32 1.0, %v1629
    %v1631 = vrcp.pop %v1625
    %v1632 = vmul.f32 1.0, %v1631
    %v1633 = vrcp.pop %v1626
    %v1634 = vmul.f32 1.0, %v1633
    %v1635 = vrcp.pop %v1627
    %v1636 = vmul.f32 1.0, %v1635
    %v1637 = vrcp.pop %v1628
    %v1638 = vmul.f32 1.0, %v1637
    %v1639 = vtanh.pop %v1604
    %v1640 = vtanh.pop %v1605
    %v1641 = vtanh.pop %v1606
    %v1642 = vtanh.pop %v1607
    %v1643 = vtanh.pop %v1608
    %v1644 = vmul.f32 %v1630, %v1047
    %v1645 = vmul.f32 %v1632, %v1048
    %v1646 = vmul.f32 %v1634, %v1049
    %v1647 = vmul.f32 %v1636, %v1050
    %v1648 = vmul.f32 %v1638, %v1051
    %1654 = vrot.lane.b32.xlu0 %v1639, 64
    %v1655 = vpop.permute.xlu0 %1654
    %1656 = vrot.lane.b32.xlu0 %v1640, 64
    %v1657 = vpop.permute.xlu0 %1656
    %1658 = vrot.lane.b32.xlu0 %v1641, 64
    %v1659 = vpop.permute.xlu0 %1658
    %1660 = vrot.lane.b32.xlu0 %v1642, 64
    %v1661 = vpop.permute.xlu0 %1660
    %1662 = vrot.lane.b32.xlu0 %v1643, 64
    %v1663 = vpop.permute.xlu0 %1662
    %v1669 = vmul.f32 %v1630, %v1655
    %v1670 = vmul.f32 %v1632, %v1657
    %v1671 = vmul.f32 %v1634, %v1659
    %v1672 = vmul.f32 %v1636, %v1661
    %v1673 = vmul.f32 %v1638, %v1663
    %1679 = vrot.lane.b32.xlu0 %v1669, 32
    %v1680 = vpop.permute.xlu0 %1679
    %1681 = vrot.lane.b32.xlu0 %v1670, 32
    %v1682 = vpop.permute.xlu0 %1681
    %1683 = vrot.lane.b32.xlu0 %v1671, 32
    %v1684 = vpop.permute.xlu0 %1683
    %1685 = vrot.lane.b32.xlu0 %v1672, 32
    %v1686 = vpop.permute.xlu0 %1685
    %1687 = vrot.lane.b32.xlu0 %v1673, 32
    %v1688 = vpop.permute.xlu0 %1687
    %v1694 = vadd.f32 %v1644, %v1680
    %v1695 = vadd.f32 %v1645, %v1682
    %v1696 = vadd.f32 %v1646, %v1684
    %v1697 = vadd.f32 %v1647, %v1686
    %v1698 = vadd.f32 %v1648, %v1688
    %v1699 = vtanh.pop %v1694
    %v1700 = vtanh.pop %v1695
    %v1701 = vtanh.pop %v1696
    %v1702 = vtanh.pop %v1697
    %v1703 = vtanh.pop %v1698
    %1709 = vrot.lane.b32.xlu0 %v1699, 64
    %v1710 = vpop.permute.xlu0 %1709
    %1711 = vrot.lane.b32.xlu0 %v1700, 64
    %v1712 = vpop.permute.xlu0 %1711
    %1713 = vrot.lane.b32.xlu0 %v1701, 64
    %v1714 = vpop.permute.xlu0 %1713
    %1715 = vrot.lane.b32.xlu0 %v1702, 64
    %v1716 = vpop.permute.xlu0 %1715
    %1717 = vrot.lane.b32.xlu0 %v1703, 64
    %v1718 = vpop.permute.xlu0 %1717
    %v1724 = vmul.f32 %v1630, %v1710
    %v1725 = vmul.f32 %v1632, %v1712
    %v1726 = vmul.f32 %v1634, %v1714
    %v1727 = vmul.f32 %v1636, %v1716
    %v1728 = vmul.f32 %v1638, %v1718
    %v1729 = vmul.f32 %v1724, %v1085
    %v1730 = vmul.f32 %v1725, %v1090
    %v1731 = vmul.f32 %v1726, %v1095
    %v1732 = vmul.f32 %v1727, %v1100
    %v1733 = vmul.f32 %v1728, %v1105
    %v1734 = vadd.f32 %v1729, %v1115
    %v1735 = vadd.f32 %v1730, %v1120
    %v1736 = vadd.f32 %v1731, %v1125
    %v1737 = vadd.f32 %v1732, %v1130
    %v1738 = vadd.f32 %v1733, %v1135
    %1744 = vrot.lane.b32.xlu0 %v1734, 32
    %v1745 = vpop.permute.xlu0 %1744
    %1746 = vrot.lane.b32.xlu0 %v1735, 32
    %v1747 = vpop.permute.xlu0 %1746
    %1748 = vrot.lane.b32.xlu0 %v1736, 32
    %v1749 = vpop.permute.xlu0 %1748
    %1750 = vrot.lane.b32.xlu0 %v1737, 32
    %v1751 = vpop.permute.xlu0 %1750
    %1752 = vrot.lane.b32.xlu0 %v1738, 32
    %v1753 = vpop.permute.xlu0 %1752
    %1764 = vrot.lane.b32.xlu0 %v1394, 64
    %v1765 = vpop.permute.xlu0 %1764
    %1766 = vrot.lane.b32.xlu0 %v1395, 64
    %v1767 = vpop.permute.xlu0 %1766
    %1768 = vrot.lane.b32.xlu0 %v1396, 64
    %v1769 = vpop.permute.xlu0 %1768
    %1770 = vrot.lane.b32.xlu0 %v1397, 64
    %v1771 = vpop.permute.xlu0 %1770
    %1772 = vrot.lane.b32.xlu0 %v1398, 64
    %v1773 = vpop.permute.xlu0 %1772
    %v1779 = vsel %vm154, %v1745, %v1765
    %v1780 = vsel %vm154, %v1747, %v1767
    %v1781 = vsel %vm154, %v1749, %v1769
    %v1782 = vsel %vm154, %v1751, %v1771
    %v1783 = vsel %vm154, %v1753, %v1773
    %v1785 = vsel %vm1173, %v1779, 0
    %v1788 = vsel %vm1173, %v1780, 0
    %v1791 = vsel %vm1173, %v1781, 0
    %v1794 = vsel %vm1173, %v1782, 0
    %v1797 = vsel %vm1173, %v1783, 0
    %1799 = vmatprep.subr.mxu0 0.0
    %1800 = vmatpush1.msra.mxu0 %v830
    %1801 = vmatprep.subr.mxu0 0.0
    %1802 = vmatpush1.msra.mxu0 %v831
    %1803 = vmatprep.subr.mxu0 0.0
    %1804 = vmatpush1.msra.mxu0 %v832
    %1805 = vmatprep.subr.mxu0 0.0
    %1806 = vmatpush1.msra.mxu0 %v833
    %1807 = vmatprep.subr.mxu0 0.0
    %1808 = vmatpush1.msra.mxu0 %v834
    %1809 = vmatprep.subr.mxu0 0.0
    %1810 = vmatpush1.msra.mxu0 %v835
    %1811 = vmatprep.subr.mxu0 0.0
    %1812 = vmatpush1.msra.mxu0 %v836
    %1813 = vmatprep.subr.mxu0 0.0
    %1814 = vmatpush1.msra.mxu0 %v837
    %1815 = vmatprep.subr.mxu0 0.0
    %1816 = vmatpush1.msra.mxu0 0.0
    %1817 = vmatprep.subr.mxu0 0.0
    %1818 = vmatpush1.msra.mxu0 0.0
    %1819 = vmatprep.subr.mxu0 0.0
    %1820 = vmatpush1.msra.mxu0 0.0
    %1821 = vmatprep.subr.mxu0 0.0
    %1822 = vmatpush1.msra.mxu0 0.0
    %1823 = vmatprep.subr.mxu0 0.0
    %1824 = vmatpush1.msra.mxu0 0.0
    %1825 = vmatprep.subr.mxu0 0.0
    %1826 = vmatpush1.msra.mxu0 0.0
    %1827 = vmatprep.subr.mxu0 0.0
    %1828 = vmatpush1.msra.mxu0 0.0
    %1829 = vmatprep.subr.mxu0 0.0
    %1830 = vmatpush1.msra.mxu0 0.0
    %1831 = vmatprep.subr.mxu0 0.0
    %1832 = vmatpush1.msra.mxu0 0.0
    %1833 = vmatprep.subr.mxu0 0.0
    %1834 = vmatpush1.msra.mxu0 0.0
    %1835 = vmatprep.subr.mxu0 0.0
    %1836 = vmatpush1.msra.mxu0 0.0
    %1837 = vmatprep.subr.mxu0 0.0
    %1838 = vmatpush1.msra.mxu0 0.0
    %1839 = vmatprep.subr.mxu0 0.0
    %1840 = vmatpush1.msra.mxu0 0.0
    %1841 = vmatprep.subr.mxu0 0.0
    %1842 = vmatpush1.msra.mxu0 0.0
    %1843 = vmatprep.subr.mxu0 0.0
    %1844 = vmatpush1.msra.mxu0 0.0
    %1845 = vmatprep.subr.mxu0 0.0
    %1846 = vmatpush1.msra.mxu0 0.0
    %1847 = vmatprep.subr.mxu0 0.0
    %1848 = vmatpush1.msra.mxu0 0.0
    %1849 = vmatprep.subr.mxu0 0.0
    %1850 = vmatpush1.msra.mxu0 0.0
    %1851 = vmatprep.subr.mxu0 0.0
    %1852 = vmatpush1.msra.mxu0 0.0
    %1853 = vmatprep.subr.mxu0 0.0
    %1854 = vmatpush1.msra.mxu0 0.0
    %1855 = vmatprep.subr.mxu0 0.0
    %1856 = vmatpush1.msra.mxu0 0.0
    %1857 = vmatprep.subr.mxu0 0.0
    %1858 = vmatpush1.msra.mxu0 0.0
    %1859 = vmatprep.subr.mxu0 0.0
    %1860 = vmatpush1.msra.mxu0 0.0
    %1861 = vmatprep.subr.mxu0 0.0
    %1862 = vmatpush1.msra.mxu0 0.0
    %1863 = vmatprep.mubr.f32.mxu0 0.0
    %1864 = vmatmul.mubr.f32.gmra.mrb[0].mxu0 %v1785
    %v1865 = vpop.f32.mrb[0].mxu0
    %v1866 = vadd.f32 %v1171, %v1865
    %v1867 = vpop.f32.mrb[0].mxu0
    %1868 = vmatprep.mubr.f32.mxu0 0.0
    %1869 = vmatmul.mubr.f32.gmra.mrb[0].mxu0 %v1788
    %v1870 = vpop.f32.mrb[0].mxu0
    %v1871 = vadd.f32 %v1171, %v1870
    %v1872 = vpop.f32.mrb[0].mxu0
    %1873 = vmatprep.mubr.f32.mxu0 0.0
    %1874 = vmatmul.mubr.f32.gmra.mrb[0].mxu0 %v1791
    %v1875 = vpop.f32.mrb[0].mxu0
    %v1876 = vadd.f32 %v1171, %v1875
    %v1877 = vpop.f32.mrb[0].mxu0
    %1878 = vmatprep.mubr.f32.mxu0 0.0
    %1879 = vmatmul.mubr.f32.gmra.mrb[0].mxu0 %v1794
    %v1880 = vpop.f32.mrb[0].mxu0
    %v1881 = vadd.f32 %v1171, %v1880
    %v1882 = vpop.f32.mrb[0].mxu0
    %1883 = vmatprep.mubr.f32.mxu0 0.0
    %1884 = vmatmul.mubr.f32.gmra.mrb[0].mxu0 %v1797
    %v1885 = vpop.f32.mrb[0].mxu0
    %v1886 = vadd.f32 %v1171, %v1885
    %v1887 = vpop.f32.mrb[0].mxu0
    %1888 = vdwg.mxu0
    %v1889 = vxor.u32 %v1866, 2147483648
    %v1890 = vxor.u32 %v1871, 2147483648
    %v1891 = vxor.u32 %v1876, 2147483648
    %v1892 = vxor.u32 %v1881, 2147483648
    %v1893 = vxor.u32 %v1886, 2147483648
    %v1894 = vmul.f32 %v1889, 1.442695
    %v1895 = vpow.pop %v1894
    %v1896 = vmul.f32 %v1890, 1.442695
    %v1897 = vpow.pop %v1896
    %v1898 = vmul.f32 %v1891, 1.442695
    %v1899 = vpow.pop %v1898
    %v1900 = vmul.f32 %v1892, 1.442695
    %v1901 = vpow.pop %v1900
    %v1902 = vmul.f32 %v1893, 1.442695
    %v1903 = vpow.pop %v1902
    %v1904 = vadd.f32 %v1895, 1.0
    %v1905 = vadd.f32 %v1897, 1.0
    %v1906 = vadd.f32 %v1899, 1.0
    %v1907 = vadd.f32 %v1901, 1.0
    %v1908 = vadd.f32 %v1903, 1.0
    %v1909 = vrcp.pop %v1904
    %v1910 = vmul.f32 1.0, %v1909
    %v1911 = vrcp.pop %v1905
    %v1912 = vmul.f32 1.0, %v1911
    %v1913 = vrcp.pop %v1906
    %v1914 = vmul.f32 1.0, %v1913
    %v1915 = vrcp.pop %v1907
    %v1916 = vmul.f32 1.0, %v1915
    %v1917 = vrcp.pop %v1908
    %v1918 = vmul.f32 1.0, %v1917
    %v1919 = vtanh.pop %v1866
    %v1920 = vtanh.pop %v1871
    %v1921 = vtanh.pop %v1876
    %v1922 = vtanh.pop %v1881
    %v1923 = vtanh.pop %v1886
    %v1924 = vmul.f32 %v1910, %v1364
    %v1925 = vmul.f32 %v1912, %v1365
    %v1926 = vmul.f32 %v1914, %v1366
    %v1927 = vmul.f32 %v1916, %v1367
    %v1928 = vmul.f32 %v1918, %v1368
    %1934 = vrot.lane.b32.xlu0 %v1919, 64
    %v1935 = vpop.permute.xlu0 %1934
    %1936 = vrot.lane.b32.xlu0 %v1920, 64
    %v1937 = vpop.permute.xlu0 %1936
    %1938 = vrot.lane.b32.xlu0 %v1921, 64
    %v1939 = vpop.permute.xlu0 %1938
    %1940 = vrot.lane.b32.xlu0 %v1922, 64
    %v1941 = vpop.permute.xlu0 %1940
    %1942 = vrot.lane.b32.xlu0 %v1923, 64
    %v1943 = vpop.permute.xlu0 %1942
    %v1949 = vmul.f32 %v1910, %v1935
    %v1950 = vmul.f32 %v1912, %v1937
    %v1951 = vmul.f32 %v1914, %v1939
    %v1952 = vmul.f32 %v1916, %v1941
    %v1953 = vmul.f32 %v1918, %v1943
    %1959 = vrot.lane.b32.xlu0 %v1949, 32
    %v1960 = vpop.permute.xlu0 %1959
    %1961 = vrot.lane.b32.xlu0 %v1950, 32
    %v1962 = vpop.permute.xlu0 %1961
    %1963 = vrot.lane.b32.xlu0 %v1951, 32
    %v1964 = vpop.permute.xlu0 %1963
    %1965 = vrot.lane.b32.xlu0 %v1952, 32
    %v1966 = vpop.permute.xlu0 %1965
    %1967 = vrot.lane.b32.xlu0 %v1953, 32
    %v1968 = vpop.permute.xlu0 %1967
    %v1974 = vadd.f32 %v1924, %v1960
    %v1975 = vadd.f32 %v1925, %v1962
    %v1976 = vadd.f32 %v1926, %v1964
    %v1977 = vadd.f32 %v1927, %v1966
    %v1978 = vadd.f32 %v1928, %v1968
    %v1979 = vtanh.pop %v1974
    %v1980 = vtanh.pop %v1975
    %v1981 = vtanh.pop %v1976
    %v1982 = vtanh.pop %v1977
    %v1983 = vtanh.pop %v1978
    %1989 = vrot.lane.b32.xlu0 %v1979, 64
    %v1990 = vpop.permute.xlu0 %1989
    %1991 = vrot.lane.b32.xlu0 %v1980, 64
    %v1992 = vpop.permute.xlu0 %1991
    %1993 = vrot.lane.b32.xlu0 %v1981, 64
    %v1994 = vpop.permute.xlu0 %1993
    %1995 = vrot.lane.b32.xlu0 %v1982, 64
    %v1996 = vpop.permute.xlu0 %1995
    %1997 = vrot.lane.b32.xlu0 %v1983, 64
    %v1998 = vpop.permute.xlu0 %1997
    %v2004 = vmul.f32 %v1910, %v1990
    %v2005 = vmul.f32 %v1912, %v1992
    %v2006 = vmul.f32 %v1914, %v1994
    %v2007 = vmul.f32 %v1916, %v1996
    %v2008 = vmul.f32 %v1918, %v1998
    %v2009 = vmul.f32 %v2004, %v1402
    %v2010 = vmul.f32 %v2005, %v1407
    %v2011 = vmul.f32 %v2006, %v1412
    %v2012 = vmul.f32 %v2007, %v1417
    %v2013 = vmul.f32 %v2008, %v1422
    %v2014 = vadd.f32 %v2009, %v1432
    %v2015 = vadd.f32 %v2010, %v1437
    %v2016 = vadd.f32 %v2011, %v1442
    %v2017 = vadd.f32 %v2012, %v1447
    %v2018 = vadd.f32 %v2013, %v1452
    %2024 = vrot.lane.b32.xlu0 %v2014, 32
    %v2025 = vpop.permute.xlu0 %2024
    %2026 = vrot.lane.b32.xlu0 %v2015, 32
    %v2027 = vpop.permute.xlu0 %2026
    %2028 = vrot.lane.b32.xlu0 %v2016, 32
    %v2029 = vpop.permute.xlu0 %2028
    %2030 = vrot.lane.b32.xlu0 %v2017, 32
    %v2031 = vpop.permute.xlu0 %2030
    %2032 = vrot.lane.b32.xlu0 %v2018, 32
    %v2033 = vpop.permute.xlu0 %2032
    %s2039 = scalar_lea.vmem [#allocation3], 40
    %2040 = vst.msk [vmem:[%s2039] sm:$0xff] %vm154, %v2025
    %2041 = vst.msk [vmem:[%s2039 + $0x8] sm:$0xff] %vm154, %v2027
    %2042 = vst.msk [vmem:[%s2039 + $0x10] sm:$0xff] %vm154, %v2029
    %2043 = vst.msk [vmem:[%s2039 + $0x18] sm:$0xff] %vm154, %v2031
    %2044 = vst.msk [vmem:[%s2039 + $0x20] sm:$0xff] %vm154, %v2033
    %v2045 = vld [vmem:[#allocation3] sm:$0xff]
    %v2046 = vld [vmem:[#allocation3 + $0x8] sm:$0xff]
    %v2047 = vld [vmem:[#allocation3 + $0x10] sm:$0xff]
    %v2048 = vld [vmem:[#allocation3 + $0x18] sm:$0xff]
    %v2049 = vld [vmem:[#allocation3 + $0x20] sm:$0xff]
    %v2050 = vld [vmem:[#allocation3 + $0x28] sm:$0xff]
    %v2051 = vld [vmem:[#allocation3 + $0x30] sm:$0xff]
    %v2052 = vld [vmem:[#allocation3 + $0x38] sm:$0xff]
    %v2053 = vld [vmem:[#allocation3 + $0x40] sm:$0xff]
    %v2054 = vld [vmem:[#allocation3 + $0x48] sm:$0xff]
    %v2055 = vld [vmem:[%s14] sm:$0xff]
    %v2056 = vld [vmem:[%s14 + $0x8] sm:$0xff]
    %v2057 = vld [vmem:[%s14 + $0x10] sm:$0xff]
    %v2058 = vld [vmem:[%s14 + $0x18] sm:$0xff]
    %v2059 = vld [vmem:[%s14 + $0x20] sm:$0xff]
    %v2060 = vmul.f32 %v2045, %v2055
    %v2061 = vmul.f32 %v2046, %v2056
    %v2062 = vmul.f32 %v2047, %v2057
    %v2063 = vmul.f32 %v2048, %v2058
    %v2064 = vmul.f32 %v2049, %v2059
    %v2065 = vmul.f32 %v2050, %v2055
    %v2066 = vmul.f32 %v2051, %v2056
    %v2067 = vmul.f32 %v2052, %v2057
    %v2068 = vmul.f32 %v2053, %v2058
    %v2069 = vmul.f32 %v2054, %v2059
    %v2070 = vsel %vm154, %v2060, 0.0
    %2071 = vadd.xlane.f32.xlu0 %v2070
    %v2072 = vpop.xlane.xlu0 %2071
    %v2073 = vsel %vm154, %v2061, 0.0
    %2074 = vadd.xlane.f32.xlu0 %v2073
    %v2075 = vpop.xlane.xlu0 %2074
    %v2076 = vsel %vm154, %v2062, 0.0
    %2077 = vadd.xlane.f32.xlu0 %v2076
    %v2078 = vpop.xlane.xlu0 %2077
    %v2079 = vsel %vm154, %v2063, 0.0
    %2080 = vadd.xlane.f32.xlu0 %v2079
    %v2081 = vpop.xlane.xlu0 %2080
    %v2082 = vsel %vm154, %v2064, 0.0
    %2083 = vadd.xlane.f32.xlu0 %v2082
    %v2084 = vpop.xlane.xlu0 %2083
    %v2085 = vsel %vm154, %v2065, 0.0
    %2086 = vadd.xlane.f32.xlu0 %v2085
    %v2087 = vpop.xlane.xlu0 %2086
    %v2088 = vsel %vm154, %v2066, 0.0
    %2089 = vadd.xlane.f32.xlu0 %v2088
    %v2090 = vpop.xlane.xlu0 %2089
    %v2091 = vsel %vm154, %v2067, 0.0
    %2092 = vadd.xlane.f32.xlu0 %v2091
    %v2093 = vpop.xlane.xlu0 %2092
    %v2094 = vsel %vm154, %v2068, 0.0
    %2095 = vadd.xlane.f32.xlu0 %v2094
    %v2096 = vpop.xlane.xlu0 %2095
    %v2097 = vsel %vm154, %v2069, 0.0
    %2098 = vadd.xlane.f32.xlu0 %v2097
    %v2099 = vpop.xlane.xlu0 %2098
    %v2110 = vlaneseq
    %v2111 = vand.u32 %v2110, 127
    %v2112 = vlaneseq
    %v2113 = vshrl.u32 %v2112, 7
    %v2114 = vsub.s32 %v2111, %v2113
    %v2115 = vrot.slane %v2072, %v2114
    %v2116 = vadd.s32 %v2111, 4294967288
    %v2117 = vlaneseq
    %v2118 = vshrl.u32 %v2117, 7
    %v2119 = vsub.s32 %v2116, %v2118
    %v2120 = vrot.slane %v2075, %v2119
    %vm2121 = vcmask 130112
    %v2122 = vsel %vm2121, %v2120, %v2115
    %v2123 = vadd.s32 %v2111, 4294967280
    %v2124 = vlaneseq
    %v2125 = vshrl.u32 %v2124, 7
    %v2126 = vsub.s32 %v2123, %v2125
    %v2127 = vrot.slane %v2078, %v2126
    %vm2128 = vcmask 195712
    %v2129 = vsel %vm2128, %v2127, %v2122
    %v2130 = vadd.s32 %v2111, 4294967272
    %v2131 = vlaneseq
    %v2132 = vshrl.u32 %v2131, 7
    %v2133 = vsub.s32 %v2130, %v2132
    %v2134 = vrot.slane %v2081, %v2133
    %vm2135 = vcmask 261312
    %v2136 = vsel %vm2135, %v2134, %v2129
    %v2137 = vadd.s32 %v2111, 4294967264
    %v2138 = vlaneseq
    %v2139 = vshrl.u32 %v2138, 7
    %v2140 = vsub.s32 %v2137, %v2139
    %v2141 = vrot.slane %v2084, %v2140
    %vm2142 = vcmask 326912
    %v2143 = vsel %vm2142, %v2141, %v2136
    %v2144 = vlaneseq
    %v2145 = vshrl.u32 %v2144, 7
    %v2146 = vsub.s32 %v2111, %v2145
    %v2147 = vrot.slane %v2087, %v2146
    %v2148 = vlaneseq
    %v2149 = vshrl.u32 %v2148, 7
    %v2150 = vsub.s32 %v2116, %v2149
    %v2151 = vrot.slane %v2090, %v2150
    %v2152 = vsel %vm2121, %v2151, %v2147
    %v2153 = vlaneseq
    %v2154 = vshrl.u32 %v2153, 7
    %v2155 = vsub.s32 %v2123, %v2154
    %v2156 = vrot.slane %v2093, %v2155
    %v2157 = vsel %vm2128, %v2156, %v2152
    %v2158 = vlaneseq
    %v2159 = vshrl.u32 %v2158, 7
    %v2160 = vsub.s32 %v2130, %v2159
    %v2161 = vrot.slane %v2096, %v2160
    %v2162 = vsel %vm2135, %v2161, %v2157
    %v2163 = vlaneseq
    %v2164 = vshrl.u32 %v2163, 7
    %v2165 = vsub.s32 %v2137, %v2164
    %v2166 = vrot.slane %v2099, %v2165
    %v2167 = vsel %vm2142, %v2166, %v2162
    %vm2168 = vcmask 1041409
    %v2169 = vsel %vm2168, %v2167, %v2143
    %vm2171 = vcmask 320512
    %v2172 = vsel %vm2171, %v2169, 0.0
    %2173 = vadd.xlane.f32.xlu0 %v2172
    %v2174 = vpop.xlane.xlu0 %2173
    %s2175 = scalar_lea.vmem %s14, 40
    %v2176 = vld [vmem:[%s2175] sm:$0xff]
    %v2177 = vld [vmem:[%s2175 + $0x8] sm:$0xff]
    %v2178 = vld [vmem:[%s2175 + $0x10] sm:$0xff]
    %v2179 = vld [vmem:[%s2175 + $0x18] sm:$0xff]
    %v2180 = vld [vmem:[%s2175 + $0x20] sm:$0xff]
    %v2181 = vmul.f32 %v2045, %v2176
    %v2182 = vmul.f32 %v2046, %v2177
    %v2183 = vmul.f32 %v2047, %v2178
    %v2184 = vmul.f32 %v2048, %v2179
    %v2185 = vmul.f32 %v2049, %v2180
    %v2186 = vmul.f32 %v2050, %v2176
    %v2187 = vmul.f32 %v2051, %v2177
    %v2188 = vmul.f32 %v2052, %v2178
    %v2189 = vmul.f32 %v2053, %v2179
    %v2190 = vmul.f32 %v2054, %v2180
    %v2191 = vsel %vm154, %v2181, 0.0
    %2192 = vadd.xlane.f32.xlu0 %v2191
    %v2193 = vpop.xlane.xlu0 %2192
    %v2194 = vsel %vm154, %v2182, 0.0
    %2195 = vadd.xlane.f32.xlu0 %v2194
    %v2196 = vpop.xlane.xlu0 %2195
    %v2197 = vsel %vm154, %v2183, 0.0
    %2198 = vadd.xlane.f32.xlu0 %v2197
    %v2199 = vpop.xlane.xlu0 %2198
    %v2200 = vsel %vm154, %v2184, 0.0
    %2201 = vadd.xlane.f32.xlu0 %v2200
    %v2202 = vpop.xlane.xlu0 %2201
    %v2203 = vsel %vm154, %v2185, 0.0
    %2204 = vadd.xlane.f32.xlu0 %v2203
    %v2205 = vpop.xlane.xlu0 %2204
    %v2206 = vsel %vm154, %v2186, 0.0
    %2207 = vadd.xlane.f32.xlu0 %v2206
    %v2208 = vpop.xlane.xlu0 %2207
    %v2209 = vsel %vm154, %v2187, 0.0
    %2210 = vadd.xlane.f32.xlu0 %v2209
    %v2211 = vpop.xlane.xlu0 %2210
    %v2212 = vsel %vm154, %v2188, 0.0
    %2213 = vadd.xlane.f32.xlu0 %v2212
    %v2214 = vpop.xlane.xlu0 %2213
    %v2215 = vsel %vm154, %v2189, 0.0
    %2216 = vadd.xlane.f32.xlu0 %v2215
    %v2217 = vpop.xlane.xlu0 %2216
    %v2218 = vsel %vm154, %v2190, 0.0
    %2219 = vadd.xlane.f32.xlu0 %v2218
    %v2220 = vpop.xlane.xlu0 %2219
    %v2231 = vlaneseq
    %v2232 = vshrl.u32 %v2231, 7
    %v2233 = vsub.s32 %v2111, %v2232
    %v2234 = vrot.slane %v2193, %v2233
    %v2235 = vlaneseq
    %v2236 = vshrl.u32 %v2235, 7
    %v2237 = vsub.s32 %v2116, %v2236
    %v2238 = vrot.slane %v2196, %v2237
    %v2239 = vsel %vm2121, %v2238, %v2234
    %v2240 = vlaneseq
    %v2241 = vshrl.u32 %v2240, 7
    %v2242 = vsub.s32 %v2123, %v2241
    %v2243 = vrot.slane %v2199, %v2242
    %v2244 = vsel %vm2128, %v2243, %v2239
    %v2245 = vlaneseq
    %v2246 = vshrl.u32 %v2245, 7
    %v2247 = vsub.s32 %v2130, %v2246
    %v2248 = vrot.slane %v2202, %v2247
    %v2249 = vsel %vm2135, %v2248, %v2244
    %v2250 = vlaneseq
    %v2251 = vshrl.u32 %v2250, 7
    %v2252 = vsub.s32 %v2137, %v2251
    %v2253 = vrot.slane %v2205, %v2252
    %v2254 = vsel %vm2142, %v2253, %v2249
    %v2255 = vlaneseq
    %v2256 = vshrl.u32 %v2255, 7
    %v2257 = vsub.s32 %v2111, %v2256
    %v2258 = vrot.slane %v2208, %v2257
    %v2259 = vlaneseq
    %v2260 = vshrl.u32 %v2259, 7
    %v2261 = vsub.s32 %v2116, %v2260
    %v2262 = vrot.slane %v2211, %v2261
    %v2263 = vsel %vm2121, %v2262, %v2258
    %v2264 = vlaneseq
    %v2265 = vshrl.u32 %v2264, 7
    %v2266 = vsub.s32 %v2123, %v2265
    %v2267 = vrot.slane %v2214, %v2266
    %v2268 = vsel %vm2128, %v2267, %v2263
    %v2269 = vlaneseq
    %v2270 = vshrl.u32 %v2269, 7
    %v2271 = vsub.s32 %v2130, %v2270
    %v2272 = vrot.slane %v2217, %v2271
    %v2273 = vsel %vm2135, %v2272, %v2268
    %v2274 = vlaneseq
    %v2275 = vshrl.u32 %v2274, 7
    %v2276 = vsub.s32 %v2137, %v2275
    %v2277 = vrot.slane %v2220, %v2276
    %v2278 = vsel %vm2142, %v2277, %v2273
    %v2279 = vsel %vm2168, %v2278, %v2254
    %v2281 = vsel %vm2171, %v2279, 0.0
    %2282 = vadd.xlane.f32.xlu0 %v2281
    %v2283 = vpop.xlane.xlu0 %2282
    %vm2284 = vcmask 7168
    %v2285 = vsel %vm2284, %v2174, %v2283
    %v2286 = vld [vmem:[%s15] sm:$0x1]
    %v2288 = vlaneseq
    %v2289 = vshrl.u32 %v2288, 7
    %v2290 = vsub.s32 0, %v2289
    %v2291 = vrot.slane %v2286, %v2290
    %v2293 = vadd.f32 %v2285, %v2291
    %vm2294 = vcmask 9216
    %v2295 = vsel %vm2294, %v2293, -inf
    %2296 = vmax.xlane.f32.xlu0 %v2295
    %v2297 = vpop.xlane.xlu0 %2296
    %v2298 = vsub.f32 %v2293, %v2297
    %v2299 = vmul.f32 %v2298, 1.442695
    %v2300 = vpow.pop %v2299
    %v2301 = vsel %vm2294, %v2300, 0.0
    %2302 = vadd.xlane.f32.xlu0 %v2301
    %v2303 = vpop.xlane.xlu0 %2302
    %v2304 = vrcp.pop %v2303
    %v2305 = vmul.f32 %v2300, %v2304
    %2306 = vst.msk [vmem:[#allocation4] sm:$0x3] %vm2294, %v2305
    // Predicated region
    $region66: #{cnn_lstm_forward.1} parent=1 // pred_check
      _
    $region67: #{cnn_lstm_forward.1} parent=1 // pred_check_branch
      %2308 = sbr.rel (0) target = $region69
    $region68: #{cnn_lstm_forward.1} parent=1 // pred_region
      %s2310 = ssub.s32 32, 32
      %2311 = vsyncadd [#allocation5], %s2310
      %s2313 = sshll.u32 [#allocation4], 4
      %s2314 = int_to_ptr.vmem [resolvable:$true] %s2313
      %2316 = dma.vmem_to_hbm [thread:$0]  %s2314, 32, %s16, [#allocation5]
    $region69: #{cnn_lstm_forward.1} parent=1 // pred_fallthru
      _
    // Predicated region
    $region70: #{cnn_lstm_forward.1} parent=1 // pred_check
      _
    $region71: #{cnn_lstm_forward.1} parent=1 // pred_check_branch
      %2318 = sbr.rel (0) target = $region73
    $region72: #{cnn_lstm_forward.1} parent=1 // pred_region
      %2319 = dma.done [#allocation5], 32
    $region73: #{cnn_lstm_forward.1} parent=1 // pred_fallthru
      _
    %2320 = vsyncpa [#allocation5], 1

</llo_original>
